<compile_context>
chip_gen: v5e
topology: v5e:2x2
jax: 0.10.0
libtpu: 0.0.40
codegen_flags: <defaults>
</compile_context>

<pallas_src>
import functools
import math

import jax
import jax.numpy as jnp
from jax.experimental import pallas as pl
from jax.experimental.pallas import tpu as pltpu


def _attention_pooler_kernel(
    x_ref,                          # (block_b*S, D_in)            f32
    qh_ref,                         # (H, Nq, hd)                  bf16 (ln_q + Wq + bq, pre-scaled)
    ln_k_w_ref, ln_k_b_ref,         # (1, D_in)                    f32
    wkvT_ref, bkv_ref,              # (D_in, 2*D_out) bf16, (1, 2*D_out) f32
    woT_ref, bo_ref,                # (D_out, D_pad)  bf16, (1, D_pad)   f32 (lane-padded, pads 0)
    ln_post_w_ref, ln_post_b_ref,   # (1, D_pad)                   f32 (lane-padded, pads 0)
    out_ref,                        # (block_b*Nq, D_pad)
    *, n_head, head_dim, seq_len, n_queries, block_b, d_out, d_pad, eps,
):
    f32 = jnp.float32
    mxu_dt = wkvT_ref.dtype          # bf16 operands, f32 accumulation on the MXU

    # ---- ln_k over the input embedding dim (element-wise math stays in f32). ----
    x = x_ref[...]
    mu = jnp.mean(x, axis=-1, keepdims=True)
    xc = x - mu
    var = jnp.mean(xc * xc, axis=-1, keepdims=True)
    xk = xc * jax.lax.rsqrt(var + eps) * ln_k_w_ref[...] + ln_k_b_ref[...]

    # ---- Fused K/V projection: one (R, D_in) x (D_in, 2*D_out) MXU pass, f32 accumulate. ----
    kv = jnp.dot(xk.astype(mxu_dt), wkvT_ref[...],
                 preferred_element_type=f32) + bkv_ref[...]            # (R, 2*D_out) f32

    # ---- Constants hoisted out of the per-batch loop (loaded once per grid step). ----
    q_h = qh_ref[...]                # (H, Nq, hd) bf16, already scaled by 1/sqrt(hd)
    woT = woT_ref[...]               # (D_out, D_pad) bf16
    bo = bo_ref[...]                 # (1, D_pad) f32
    lp_w = ln_post_w_ref[...]        # (1, D_pad) f32
    lp_b = ln_post_b_ref[...]        # (1, D_pad) f32

    hd, nq, S = head_dim, n_queries, seq_len

    # ---- Per-batch-element attention (small static loop; all dots are head-batched). ----
    o_rows = []
    for b in range(block_b):
        kvb = kv[b * S:(b + 1) * S, :]                                 # (S, 2*D_out) f32
        # Head-major views: one reshape + major-dim swap per tensor (no per-head
        # lane-slice + concatenate).  Relayout on f32, cast to bf16 for the MXU.
        kb = kvb[:, :d_out].reshape(S, n_head, hd).swapaxes(0, 1).astype(mxu_dt)   # (H, S, hd)
        vb = kvb[:, d_out:].reshape(S, n_head, hd).swapaxes(0, 1).astype(mxu_dt)   # (H, S, hd)

        s = jnp.einsum("hqd,hkd->hqk", q_h, kb, preferred_element_type=f32)  # (H, Nq, S) f32
        s = s - jnp.max(s, axis=-1, keepdims=True)
        p = jnp.exp(s)
        p = p * pl.reciprocal(jnp.sum(p, axis=-1, keepdims=True), approx=True)
        o_h = jnp.einsum("hqk,hkd->hqd", p.astype(mxu_dt), vb,
                         preferred_element_type=f32)                   # (H, Nq, hd) f32
        o_rows.append(o_h.swapaxes(0, 1).reshape(nq, d_out))           # (Nq, D_out) f32

    o_all = o_rows[0] if block_b == 1 else jnp.concatenate(o_rows, axis=0)  # (block_b*Nq, D_out)

    # ---- Output projection: ONE matmul with contraction depth D_out. ----
    o = jnp.dot(o_all.astype(mxu_dt), woT, preferred_element_type=f32) + bo  # (block_b*Nq, D_pad)

    # ---- ln_post over the true d_out width (two-pass centered variance).  Pad lanes of o
    #      are exactly zero (zero-padded Wo^T / bo); their contribution (pad * mu^2) to the
    #      centered sum of squares is removed exactly, and lp_w/lp_b pads zero the output. ----
    pad_cols = d_pad - d_out
    mu_o = jnp.sum(o, axis=-1, keepdims=True) * (1.0 / d_out)
    oc = o - mu_o
    var_o = (jnp.sum(oc * oc, axis=-1, keepdims=True)
             - pad_cols * mu_o * mu_o) * (1.0 / d_out)
    y = oc * jax.lax.rsqrt(var_o + eps) * lp_w + lp_b

    out_ref[...] = y.astype(out_ref.dtype)        # single lane-dense full-block store


def _layer_norm(v, w, b, eps):
    mu = jnp.mean(v, axis=-1, keepdims=True)
    vc = v - mu
    var = jnp.mean(vc * vc, axis=-1, keepdims=True)
    return vc * jax.lax.rsqrt(var + eps) * w + b


def _vmem_capacity_bytes():
    try:
        return int(pltpu.get_tpu_info().vmem_capacity_bytes)
    except Exception:
        return 64 * 1024 * 1024      # conservative default (v7x per-core VMEM)


def _estimate_vmem_bytes(block_b, S, Nq, D_in, D_out, D_pad, H, hd):
    """Rough per-grid-step VMEM footprint (tiles + major in-kernel intermediates)."""
    f32, bf16 = 4, 2
    R = block_b * S
    rows_out = block_b * Nq
    b = 0
    b += 2 * R * D_in * f32                         # x tile, double-buffered
    b += 2 * rows_out * D_pad * f32                 # out tile, double-buffered
    b += D_in * 2 * D_out * bf16                    # fused [Wk^T | Wv^T], single-buffered
    b += D_out * D_pad * bf16                       # Wo^T, single-buffered
    b += H * Nq * hd * bf16                         # queries, single-buffered
    b += 8 * max(D_in, 2 * D_out, D_pad) * f32      # biases / ln params
    b += R * D_in * (f32 + bf16)                    # xk (f32) + bf16 MXU copy
    b += R * 2 * D_out * f32                        # kv projection result
    b += 2 * S * D_out * (f32 + bf16)               # per-batch head-major K/V views
    b += 2 * H * Nq * S * f32                       # scores + probabilities
    b += rows_out * D_out * f32                     # concatenated per-head outputs
    b += 2 * rows_out * D_pad * f32                 # projected output + ln_post result
    return b


def _pick_block_b(B, S, Nq, D_in, D_out, D_pad, H, hd, vmem_cap, target_rows=1024):
    """Largest batch fold whose row count stays near the MXU/DMA sweet spot, fits VMEM,
    satisfies the (8, 128) block constraints, and keeps >= 2 grid steps when possible."""
    budget = int(0.55 * vmem_cap)

    def layout_ok(bb):
        rows_ok = (bb * S) % 8 == 0 or bb == B
        nq_ok = (bb * Nq) % 8 == 0 or bb == B
        return rows_ok and nq_ok

    divisors = [d for d in range(1, B + 1) if B % d == 0]
    valid = [d for d in divisors
             if layout_ok(d)
             and _estimate_vmem_bytes(d, S, Nq, D_in, D_out, D_pad, H, hd) <= budget]
    if not valid:
        valid = [d for d in divisors if layout_ok(d)] or [B]
    multi = [d for d in valid if B // d >= 2]        # feed both v7x TensorCores
    pool = multi if multi else valid
    small = [d for d in pool if d * S <= target_rows]
    return max(small) if small else min(pool)


def attention_pooler(x, params, *, n_head, eps=1e-5, block_b=None,
                     mxu_dtype=jnp.bfloat16, out_dtype=jnp.float32):
    B, S, D_in = x.shape
    Nq, D_out = params["query"].shape
    assert D_out % n_head == 0, "output_embed_dim must be divisible by n_head"
    hd = D_out // n_head

    D_pad = -(-D_out // 128) * 128        # lane-dense epilogue / stores
    pad = D_pad - D_out

    vmem_cap = _vmem_capacity_bytes()
    if block_b is None:
        block_b = _pick_block_b(B, S, Nq, D_in, D_out, D_pad, n_head, hd, vmem_cap)
    assert B % block_b == 0
    assert (block_b * S) % 8 == 0 or block_b == B, \
        "block_b*seq_len must be a multiple of 8 (or block_b == batch)"
    assert (block_b * Nq) % 8 == 0 or block_b == B, \
        "block_b*n_queries must be a multiple of 8 (or block_b == batch)"

    # ---- Batch-invariant query path, computed once outside the grid (f32), then bf16. ----
    q = _layer_norm(params["query"].astype(jnp.float32),
                    params["ln_q_w"], params["ln_q_b"], eps)
    q = q @ params["wq"].T + params["bq"]                              # (Nq, D_out) f32
    q = q * (1.0 / math.sqrt(hd))
    q_heads = q.reshape(Nq, n_head, hd).transpose(1, 0, 2).astype(mxu_dtype)  # (H, Nq, hd)

    # ---- Pre-shaped weights: fused KV weight, padded Wo^T; kernel never transposes. ----
    wkvT = jnp.concatenate([params["wk"].T, params["wv"].T], axis=1).astype(mxu_dtype)
    bkv = jnp.concatenate([params["bk"], params["bv"]], axis=1).astype(jnp.float32)
    woT = jnp.pad(params["wo"].T, ((0, 0), (0, pad))).astype(mxu_dtype)       # (D_out, D_pad)
    bo = jnp.pad(params["bo"], ((0, 0), (0, pad))).astype(jnp.float32)
    ln_post_w = jnp.pad(params["ln_post_w"], ((0, 0), (0, pad))).astype(jnp.float32)
    ln_post_b = jnp.pad(params["ln_post_b"], ((0, 0), (0, pad))).astype(jnp.float32)

    x2 = x.reshape(B * S, D_in).astype(jnp.float32)     # free XLA reshape; kernel sees 2-D rows

    def _const_spec(shape):
        # Grid-invariant operand: fetched once, single VMEM buffer (no double-buffer waste).
        return pl.BlockSpec(shape, lambda i: (0,) * len(shape),
                            pipeline_mode=pl.Buffered(1))

    in_specs = [
        pl.BlockSpec((block_b * S, D_in), lambda i: (i, 0)),           # x rows for this block
        _const_spec((n_head, Nq, hd)),                                 # q_heads
        _const_spec((1, D_in)), _const_spec((1, D_in)),                # ln_k w, b
        _const_spec((D_in, 2 * D_out)), _const_spec((1, 2 * D_out)),   # [Wk^T|Wv^T], [bk|bv]
        _const_spec((D_out, D_pad)), _const_spec((1, D_pad)),          # Wo^T (padded), bo
        _const_spec((1, D_pad)), _const_spec((1, D_pad)),              # ln_post w, b (padded)
    ]
    out_spec = pl.BlockSpec((block_b * Nq, D_pad), lambda i: (i, 0))

    vmem_need = _estimate_vmem_bytes(block_b, S, Nq, D_in, D_out, D_pad, n_head, hd)
    vmem_limit = min(int(0.75 * vmem_cap), max(32 * 1024 * 1024, int(1.5 * vmem_need)))

    kernel = functools.partial(
        _attention_pooler_kernel,
        n_head=n_head, head_dim=hd, seq_len=S, n_queries=Nq,
        block_b=block_b, d_out=D_out, d_pad=D_pad, eps=eps)

    out = pl.pallas_call(
        kernel,
        out_shape=jax.ShapeDtypeStruct((B * Nq, D_pad), out_dtype),
        grid=(B // block_b,),
        in_specs=in_specs,
        out_specs=out_spec,
        compiler_params=pltpu.CompilerParams(
            dimension_semantics=("parallel",),
            vmem_limit_bytes=vmem_limit),
    )(x2, q_heads,
      params["ln_k_w"], params["ln_k_b"],
      wkvT, bkv, woT, bo, ln_post_w, ln_post_b)

    return out[:, :D_out].reshape(B, Nq, D_out)


def _reference(x, params, *, n_head, eps=1e-5):
    """Pure-JAX f32 reference mirroring the PyTorch forward pass."""
    def ln(v, w, b):
        mu = jnp.mean(v, axis=-1, keepdims=True)
        var = jnp.mean(jnp.square(v - mu), axis=-1, keepdims=True)
        return (v - mu) * jax.lax.rsqrt(var + eps) * w + b

    xk = ln(x, params["ln_k_w"], params["ln_k_b"])                 # (B,S,D_in)
    q = ln(params["query"], params["ln_q_w"], params["ln_q_b"])    # (Nq,D_out)
    B = x.shape[0]
    q = jnp.broadcast_to(q[None], (B,) + q.shape)                  # repeat over batch

    q = jnp.einsum("bnd,od->bno", q, params["wq"]) + params["bq"]
    k = jnp.einsum("bsd,od->bso", xk, params["wk"]) + params["bk"]
    v = jnp.einsum("bsd,od->bso", xk, params["wv"]) + params["bv"]

    Nq, D_out = params["query"].shape
    hd = D_out // n_head
    qh = q.reshape(B, Nq, n_head, hd).transpose(0, 2, 1, 3)
    kh = k.reshape(B, -1, n_head, hd).transpose(0, 2, 1, 3)
    vh = v.reshape(B, -1, n_head, hd).transpose(0, 2, 1, 3)
    scores = jnp.einsum("bhqd,bhkd->bhqk", qh, kh) / math.sqrt(hd)
    p = jax.nn.softmax(scores, axis=-1)
    o = jnp.einsum("bhqk,bhkd->bhqd", p, vh).transpose(0, 2, 1, 3).reshape(B, Nq, D_out)
    o = jnp.einsum("bno,po->bnp", o, params["wo"]) + params["bo"]
    return ln(o, params["ln_post_w"], params["ln_post_b"])


def make_params(key, input_embed_dim, output_embed_dim, n_queries):
    ks = jax.random.split(key, 9)
    s_in = 1.0 / math.sqrt(input_embed_dim)
    s_out = 1.0 / math.sqrt(output_embed_dim)
    return {
        "query": jax.random.normal(ks[0], (n_queries, output_embed_dim), jnp.float32),
        "ln_q_w": jnp.ones((1, output_embed_dim), jnp.float32),
        "ln_q_b": jnp.zeros((1, output_embed_dim), jnp.float32),
        "ln_k_w": jnp.ones((1, input_embed_dim), jnp.float32),
        "ln_k_b": jnp.zeros((1, input_embed_dim), jnp.float32),
        "wq": jax.random.normal(ks[1], (output_embed_dim, output_embed_dim), jnp.float32) * s_out,
        "bq": jax.random.normal(ks[2], (1, output_embed_dim), jnp.float32) * 0.02,
        "wk": jax.random.normal(ks[3], (output_embed_dim, input_embed_dim), jnp.float32) * s_in,
        "bk": jax.random.normal(ks[4], (1, output_embed_dim), jnp.float32) * 0.02,
        "wv": jax.random.normal(ks[5], (output_embed_dim, input_embed_dim), jnp.float32) * s_in,
        "bv": jax.random.normal(ks[6], (1, output_embed_dim), jnp.float32) * 0.02,
        "wo": jax.random.normal(ks[7], (output_embed_dim, output_embed_dim), jnp.float32) * s_out,
        "bo": jax.random.normal(ks[8], (1, output_embed_dim), jnp.float32) * 0.02,
        "ln_post_w": jnp.ones((1, output_embed_dim), jnp.float32),
        "ln_post_b": jnp.zeros((1, output_embed_dim), jnp.float32),
    }


if __name__ == "__main__":
    # Small, deterministic config.
    batch = 2
    seq_len = 16
    input_embed_dim = 32
    output_embed_dim = 32
    n_head = 4
    n_queries = 8

    key = jax.random.PRNGKey(0)
    k_x, k_p = jax.random.split(key)
    x = jax.random.normal(k_x, (batch, seq_len, input_embed_dim), jnp.float32)
    params = make_params(k_p, input_embed_dim, output_embed_dim, n_queries)

    out = attention_pooler(x, params, n_head=n_head)
    out = jax.block_until_ready(out)
    assert out.shape == (batch, n_queries, output_embed_dim)

    ref = _reference(x, params, n_head=n_head)
    # bf16 MXU operands (f32 accumulation) + approx softmax reciprocal => compare at 2e-2.
    max_diff = float(jnp.max(jnp.abs(out - ref)))
    assert jnp.allclose(out, ref, rtol=2e-2, atol=2e-2), \
        f"mismatch vs JAX reference (max abs diff {max_diff:.4e})"

    print("KERNEL_OK")
</pallas_src>

<mosaic_0001>
module attributes {stable_mosaic.version = 11 : i64} {
  func.func @_attention_pooler_kernel(%arg0: i32, %arg1: memref<16x32xf32, #tpu.memory_space<vmem>>, %arg2: memref<4x8x8xbf16, #tpu.memory_space<vmem>>, %arg3: memref<1x32xf32, #tpu.memory_space<vmem>>, %arg4: memref<1x32xf32, #tpu.memory_space<vmem>>, %arg5: memref<32x64xbf16, #tpu.memory_space<vmem>>, %arg6: memref<1x64xf32, #tpu.memory_space<vmem>>, %arg7: memref<32x128xbf16, #tpu.memory_space<vmem>>, %arg8: memref<1x128xf32, #tpu.memory_space<vmem>>, %arg9: memref<1x128xf32, #tpu.memory_space<vmem>>, %arg10: memref<1x128xf32, #tpu.memory_space<vmem>>, %arg11: memref<8x128xf32, #tpu.memory_space<vmem>>) attributes {dimension_semantics = [#tpu.dimension_semantics<parallel>], iteration_bounds = array<i64: 2>, scalar_prefetch = 0 : i64, scratch_operands = 0 : i64, tpu.core_type = #tpu.core_type<tc>, window_params = [{transform_indices = @transform_0, window_bounds = array<i64: 16, 32>}, {pipeline_mode = #tpu.pipeline_mode<synchronous>, transform_indices = @transform_1, window_bounds = array<i64: 4, 8, 8>}, {pipeline_mode = #tpu.pipeline_mode<synchronous>, transform_indices = @transform_2, window_bounds = array<i64: 1, 32>}, {pipeline_mode = #tpu.pipeline_mode<synchronous>, transform_indices = @transform_3, window_bounds = array<i64: 1, 32>}, {pipeline_mode = #tpu.pipeline_mode<synchronous>, transform_indices = @transform_4, window_bounds = array<i64: 32, 64>}, {pipeline_mode = #tpu.pipeline_mode<synchronous>, transform_indices = @transform_5, window_bounds = array<i64: 1, 64>}, {pipeline_mode = #tpu.pipeline_mode<synchronous>, transform_indices = @transform_6, window_bounds = array<i64: 32, 128>}, {pipeline_mode = #tpu.pipeline_mode<synchronous>, transform_indices = @transform_7, window_bounds = array<i64: 1, 128>}, {pipeline_mode = #tpu.pipeline_mode<synchronous>, transform_indices = @transform_8, window_bounds = array<i64: 1, 128>}, {pipeline_mode = #tpu.pipeline_mode<synchronous>, transform_indices = @transform_9, window_bounds = array<i64: 1, 128>}, {transform_indices = @transform_10, window_bounds = array<i64: 8, 128>}]} {
    %c0 = arith.constant 0 : index
    %c0_0 = arith.constant 0 : index
    %0 = vector.load %arg1[%c0, %c0_0] : memref<16x32xf32, #tpu.memory_space<vmem>>, vector<16x32xf32>
    %cst = arith.constant dense<0.000000e+00> : vector<16xf32>
    %1 = vector.multi_reduction <add>, %0, %cst [1] : vector<16x32xf32> to vector<16xf32>
    %2 = vector.shape_cast %1 : vector<16xf32> to vector<16x1xf32>
    %cst_1 = arith.constant 3.200000e+01 : f32
    %3 = vector.broadcast %cst_1 : f32 to vector<16x1xf32>
    %4 = arith.divf %2, %3 : vector<16x1xf32>
    %5 = vector.broadcast %4 : vector<16x1xf32> to vector<16x32xf32>
    %6 = arith.subf %0, %5 : vector<16x32xf32>
    %7 = arith.mulf %6, %6 : vector<16x32xf32>
    %cst_2 = arith.constant dense<0.000000e+00> : vector<16xf32>
    %8 = vector.multi_reduction <add>, %7, %cst_2 [1] : vector<16x32xf32> to vector<16xf32>
    %9 = vector.shape_cast %8 : vector<16xf32> to vector<16x1xf32>
    %cst_3 = arith.constant 3.200000e+01 : f32
    %10 = vector.broadcast %cst_3 : f32 to vector<16x1xf32>
    %11 = arith.divf %9, %10 : vector<16x1xf32>
    %cst_4 = arith.constant 9.99999974E-6 : f32
    %12 = vector.broadcast %cst_4 : f32 to vector<16x1xf32>
    %13 = arith.addf %11, %12 : vector<16x1xf32>
    %14 = math.rsqrt %13 : vector<16x1xf32>
    %15 = vector.broadcast %14 : vector<16x1xf32> to vector<16x32xf32>
    %16 = arith.mulf %6, %15 : vector<16x32xf32>
    %c0_5 = arith.constant 0 : index
    %c0_6 = arith.constant 0 : index
    %17 = vector.load %arg3[%c0_5, %c0_6] : memref<1x32xf32, #tpu.memory_space<vmem>>, vector<1x32xf32>
    %18 = vector.broadcast %17 : vector<1x32xf32> to vector<16x32xf32>
    %19 = arith.mulf %16, %18 : vector<16x32xf32>
    %c0_7 = arith.constant 0 : index
    %c0_8 = arith.constant 0 : index
    %20 = vector.load %arg4[%c0_7, %c0_8] : memref<1x32xf32, #tpu.memory_space<vmem>>, vector<1x32xf32>
    %21 = vector.broadcast %20 : vector<1x32xf32> to vector<16x32xf32>
    %22 = arith.addf %19, %21 : vector<16x32xf32>
    %23 = arith.truncf %22 : vector<16x32xf32> to vector<16x32xbf16>
    %c0_9 = arith.constant 0 : index
    %c0_10 = arith.constant 0 : index
    %24 = vector.load %arg5[%c0_9, %c0_10] : memref<32x64xbf16, #tpu.memory_space<vmem>>, vector<32x64xbf16>
    %cst_11 = arith.constant dense<0.000000e+00> : vector<16x64xf32>
    %25 = tpu.matmul %23, %24, %cst_11 {dimension_numbers = #tpu.dot_dimension_numbers<[1], [0], [0], [1], [0, 0, 1, 1], [], []>} : vector<16x32xbf16>, vector<32x64xbf16>, vector<16x64xf32> -> vector<16x64xf32>
    %c0_12 = arith.constant 0 : index
    %c0_13 = arith.constant 0 : index
    %26 = vector.load %arg6[%c0_12, %c0_13] : memref<1x64xf32, #tpu.memory_space<vmem>>, vector<1x64xf32>
    %27 = vector.broadcast %26 : vector<1x64xf32> to vector<16x64xf32>
    %28 = arith.addf %25, %27 : vector<16x64xf32>
    %c0_14 = arith.constant 0 : index
    %c0_15 = arith.constant 0 : index
    %c0_16 = arith.constant 0 : index
    %29 = vector.load %arg2[%c0_14, %c0_15, %c0_16] : memref<4x8x8xbf16, #tpu.memory_space<vmem>>, vector<4x8x8xbf16>
    %c0_17 = arith.constant 0 : index
    %c0_18 = arith.constant 0 : index
    %30 = vector.load %arg7[%c0_17, %c0_18] : memref<32x128xbf16, #tpu.memory_space<vmem>>, vector<32x128xbf16>
    %c0_19 = arith.constant 0 : index
    %c0_20 = arith.constant 0 : index
    %31 = vector.load %arg8[%c0_19, %c0_20] : memref<1x128xf32, #tpu.memory_space<vmem>>, vector<1x128xf32>
    %c0_21 = arith.constant 0 : index
    %c0_22 = arith.constant 0 : index
    %32 = vector.load %arg9[%c0_21, %c0_22] : memref<1x128xf32, #tpu.memory_space<vmem>>, vector<1x128xf32>
    %c0_23 = arith.constant 0 : index
    %c0_24 = arith.constant 0 : index
    %33 = vector.load %arg10[%c0_23, %c0_24] : memref<1x128xf32, #tpu.memory_space<vmem>>, vector<1x128xf32>
    %34 = vector.extract_strided_slice %28 {offsets = [0, 0], sizes = [16, 32], strides = [1, 1]} : vector<16x64xf32> to vector<16x32xf32>
    %35 = vector.shape_cast %34 : vector<16x32xf32> to vector<16x4x8xf32>
    %36 = tpu.transpose %35, [1, 0, 2] : vector<16x4x8xf32> -> vector<4x16x8xf32>
    %37 = arith.truncf %36 : vector<4x16x8xf32> to vector<4x16x8xbf16>
    %38 = vector.extract_strided_slice %28 {offsets = [0, 32], sizes = [16, 32], strides = [1, 1]} : vector<16x64xf32> to vector<16x32xf32>
    %39 = vector.shape_cast %38 : vector<16x32xf32> to vector<16x4x8xf32>
    %40 = tpu.transpose %39, [1, 0, 2] : vector<16x4x8xf32> -> vector<4x16x8xf32>
    %41 = arith.truncf %40 : vector<4x16x8xf32> to vector<4x16x8xbf16>
    "tpu.trace_start"() <{level = 10 : i32, message = "hqd,hkd->hqk"}> : () -> ()
    %cst_25 = arith.constant dense<0.000000e+00> : vector<4x8x16xf32>
    %42 = tpu.matmul %29, %37, %cst_25 {dimension_numbers = #tpu.dot_dimension_numbers<[2], [2], [1], [1], [0, 0, 0, 1, 1, 1], [0], [0]>} : vector<4x8x8xbf16>, vector<4x16x8xbf16>, vector<4x8x16xf32> -> vector<4x8x16xf32>
    "tpu.trace_stop"() : () -> ()
    %cst_26 = arith.constant dense<0xFF800000> : vector<4x8xf32>
    %43 = vector.multi_reduction <maximumf>, %42, %cst_26 [2] : vector<4x8x16xf32> to vector<4x8xf32>
    %44 = vector.shape_cast %43 : vector<4x8xf32> to vector<4x8x1xf32>
    %45 = vector.broadcast %44 : vector<4x8x1xf32> to vector<4x8x16xf32>
    %46 = arith.subf %42, %45 : vector<4x8x16xf32>
    %47 = math.exp %46 : vector<4x8x16xf32>
    %cst_27 = arith.constant dense<0.000000e+00> : vector<4x8xf32>
    %48 = vector.multi_reduction <add>, %47, %cst_27 [2] : vector<4x8x16xf32> to vector<4x8xf32>
    %49 = vector.shape_cast %48 : vector<4x8xf32> to vector<4x8x1xf32>
    %50 = tpu.reciprocal %49 {approx = true} : vector<4x8x1xf32> -> vector<4x8x1xf32>
    %51 = vector.broadcast %50 : vector<4x8x1xf32> to vector<4x8x16xf32>
    %52 = arith.mulf %47, %51 : vector<4x8x16xf32>
    %53 = arith.truncf %52 : vector<4x8x16xf32> to vector<4x8x16xbf16>
    "tpu.trace_start"() <{level = 10 : i32, message = "hqk,hkd->hqd"}> : () -> ()
    %cst_28 = arith.constant dense<0.000000e+00> : vector<4x8x8xf32>
    %54 = tpu.matmul %53, %41, %cst_28 {dimension_numbers = #tpu.dot_dimension_numbers<[2], [1], [1], [2], [0, 0, 0, 1, 1, 2], [0], [0]>} : vector<4x8x16xbf16>, vector<4x16x8xbf16>, vector<4x8x8xf32> -> vector<4x8x8xf32>
    "tpu.trace_stop"() : () -> ()
    %55 = tpu.transpose %54, [1, 0, 2] : vector<4x8x8xf32> -> vector<8x4x8xf32>
    %56 = vector.shape_cast %55 : vector<8x4x8xf32> to vector<8x32xf32>
    %57 = arith.truncf %56 : vector<8x32xf32> to vector<8x32xbf16>
    %cst_29 = arith.constant dense<0.000000e+00> : vector<8x128xf32>
    %58 = tpu.matmul %57, %30, %cst_29 {dimension_numbers = #tpu.dot_dimension_numbers<[1], [0], [0], [1], [0, 0, 1, 1], [], []>} : vector<8x32xbf16>, vector<32x128xbf16>, vector<8x128xf32> -> vector<8x128xf32>
    %59 = vector.broadcast %31 : vector<1x128xf32> to vector<8x128xf32>
    %60 = arith.addf %58, %59 : vector<8x128xf32>
    %cst_30 = arith.constant dense<0.000000e+00> : vector<8xf32>
    %61 = vector.multi_reduction <add>, %60, %cst_30 [1] : vector<8x128xf32> to vector<8xf32>
    %62 = vector.shape_cast %61 : vector<8xf32> to vector<8x1xf32>
    %cst_31 = arith.constant 3.125000e-02 : f32
    %63 = vector.broadcast %cst_31 : f32 to vector<8x1xf32>
    %64 = arith.mulf %62, %63 : vector<8x1xf32>
    %65 = vector.broadcast %64 : vector<8x1xf32> to vector<8x128xf32>
    %66 = arith.subf %60, %65 : vector<8x128xf32>
    %67 = arith.mulf %66, %66 : vector<8x128xf32>
    %cst_32 = arith.constant dense<0.000000e+00> : vector<8xf32>
    %68 = vector.multi_reduction <add>, %67, %cst_32 [1] : vector<8x128xf32> to vector<8xf32>
    %69 = vector.shape_cast %68 : vector<8xf32> to vector<8x1xf32>
    %cst_33 = arith.constant 9.600000e+01 : f32
    %70 = vector.broadcast %cst_33 : f32 to vector<8x1xf32>
    %71 = arith.mulf %70, %64 : vector<8x1xf32>
    %72 = arith.mulf %71, %64 : vector<8x1xf32>
    %73 = arith.subf %69, %72 : vector<8x1xf32>
    %cst_34 = arith.constant 3.125000e-02 : f32
    %74 = vector.broadcast %cst_34 : f32 to vector<8x1xf32>
    %75 = arith.mulf %73, %74 : vector<8x1xf32>
    %cst_35 = arith.constant 9.99999974E-6 : f32
    %76 = vector.broadcast %cst_35 : f32 to vector<8x1xf32>
    %77 = arith.addf %75, %76 : vector<8x1xf32>
    %78 = math.rsqrt %77 : vector<8x1xf32>
    %79 = vector.broadcast %78 : vector<8x1xf32> to vector<8x128xf32>
    %80 = arith.mulf %66, %79 : vector<8x128xf32>
    %81 = vector.broadcast %32 : vector<1x128xf32> to vector<8x128xf32>
    %82 = arith.mulf %80, %81 : vector<8x128xf32>
    %83 = vector.broadcast %33 : vector<1x128xf32> to vector<8x128xf32>
    %84 = arith.addf %82, %83 : vector<8x128xf32>
    %c0_36 = arith.constant 0 : index
    %c0_37 = arith.constant 0 : index
    %85 = vector.load %arg11[%c0_36, %c0_37] : memref<8x128xf32, #tpu.memory_space<vmem>>, vector<8x128xf32>
    tpu.vector_store %arg11[%c0_36, %c0_37], %84 {strides = array<i32>} : memref<8x128xf32, #tpu.memory_space<vmem>>, vector<8x128xf32>,
    return
  }
  func.func @transform_0(%arg0: i32) -> (i32, i32) {
    %c0_i32 = arith.constant 0 : i32
    %c0_i32_0 = arith.constant 0 : i32
    return %arg0, %c0_i32 : i32, i32
  }
  func.func @transform_1(%arg0: i32) -> (i32, i32, i32) {
    %c0_i32 = arith.constant 0 : i32
    %c0_i32_0 = arith.constant 0 : i32
    %c0_i32_1 = arith.constant 0 : i32
    %c0_i32_2 = arith.constant 0 : i32
    return %c0_i32, %c0_i32_0, %c0_i32_1 : i32, i32, i32
  }
  func.func @transform_2(%arg0: i32) -> (i32, i32) {
    %c0_i32 = arith.constant 0 : i32
    %c0_i32_0 = arith.constant 0 : i32
    %c0_i32_1 = arith.constant 0 : i32
    return %c0_i32, %c0_i32_0 : i32, i32
  }
  func.func @transform_3(%arg0: i32) -> (i32, i32) {
    %c0_i32 = arith.constant 0 : i32
    %c0_i32_0 = arith.constant 0 : i32
    %c0_i32_1 = arith.constant 0 : i32
    return %c0_i32, %c0_i32_0 : i32, i32
  }
  func.func @transform_4(%arg0: i32) -> (i32, i32) {
    %c0_i32 = arith.constant 0 : i32
    %c0_i32_0 = arith.constant 0 : i32
    %c0_i32_1 = arith.constant 0 : i32
    return %c0_i32, %c0_i32_0 : i32, i32
  }
  func.func @transform_5(%arg0: i32) -> (i32, i32) {
    %c0_i32 = arith.constant 0 : i32
    %c0_i32_0 = arith.constant 0 : i32
    %c0_i32_1 = arith.constant 0 : i32
    return %c0_i32, %c0_i32_0 : i32, i32
  }
  func.func @transform_6(%arg0: i32) -> (i32, i32) {
    %c0_i32 = arith.constant 0 : i32
    %c0_i32_0 = arith.constant 0 : i32
    %c0_i32_1 = arith.constant 0 : i32
    return %c0_i32, %c0_i32_0 : i32, i32
  }
  func.func @transform_7(%arg0: i32) -> (i32, i32) {
    %c0_i32 = arith.constant 0 : i32
    %c0_i32_0 = arith.constant 0 : i32
    %c0_i32_1 = arith.constant 0 : i32
    return %c0_i32, %c0_i32_0 : i32, i32
  }
  func.func @transform_8(%arg0: i32) -> (i32, i32) {
    %c0_i32 = arith.constant 0 : i32
    %c0_i32_0 = arith.constant 0 : i32
    %c0_i32_1 = arith.constant 0 : i32
    return %c0_i32, %c0_i32_0 : i32, i32
  }
  func.func @transform_9(%arg0: i32) -> (i32, i32) {
    %c0_i32 = arith.constant 0 : i32
    %c0_i32_0 = arith.constant 0 : i32
    %c0_i32_1 = arith.constant 0 : i32
    return %c0_i32, %c0_i32_0 : i32, i32
  }
  func.func @transform_10(%arg0: i32) -> (i32, i32) {
    %c0_i32 = arith.constant 0 : i32
    %c0_i32_0 = arith.constant 0 : i32
    return %arg0, %c0_i32 : i32, i32
  }
}

</mosaic_0001>

<llo_original>
// kernel: tpu_custom_call.1
$region0: #{tpu_custom_call.1}
  #allocation0 [shape = 'u32[]', space=smem, size = 0x4, offset = 0x4, fixed_abs, tag = 'smem constant byte address 0x4 - core index']
  #allocation1 [shape = 'u32[72,128]{1,0:T(1,128)}', space=vmem, size = 0x9000, scoped, tag = 'internal scratch']
  %s0 = inlined_call_operand.hbm [shape: f32[32,32], index: 0, kind: input, shape index: {}]
  %s1 = inlined_call_operand.hbm [shape: bf16[4,8,8], index: 1, kind: input, shape index: {}]
  %s2 = inlined_call_operand.vmem [shape: f32[1,32], index: 2, kind: input, shape index: {}]
  %s3 = inlined_call_operand.vmem [shape: f32[1,32], index: 3, kind: input, shape index: {}]
  %s4 = inlined_call_operand.hbm [shape: bf16[32,64], index: 4, kind: input, shape index: {}]
  %s5 = inlined_call_operand.vmem [shape: f32[1,64], index: 5, kind: input, shape index: {}]
  %s6 = inlined_call_operand.hbm [shape: bf16[32,128], index: 6, kind: input, shape index: {}]
  %s7 = inlined_call_operand.vmem [shape: f32[1,128], index: 7, kind: input, shape index: {}]
  %s8 = inlined_call_operand.vmem [shape: f32[1,128], index: 8, kind: input, shape index: {}]
  %s9 = inlined_call_operand.vmem [shape: f32[1,128], index: 9, kind: input, shape index: {}]
  %s10 = inlined_call_operand.hbm [shape: f32[16,128], index: 10, kind: output, shape index: {}]
  %s11 = sld [smem:[#allocation0]]
  $region89: #{tpu_custom_call.1} parent=0
    _
  %s13 = ssub.s32 1, %s11
  %s14 = scalar_select 0, %s13, %s11
  $region1: #{tpu_custom_call.1} parent=0
    #allocation2 [shape = 'u8[16384]{0}', space=vmem, size = 0x4000, scoped, tag = 'input window, operand 0']
    #allocation3 [shape = 's32[2]{0}', space=sflag, size = 0x8, scoped, tag = 'scoped memory for tpu_custom_call.1']
    #allocation4 [shape = 's32[2]{0}', space=sflag, size = 0x8, scoped, tag = 'scoped memory for tpu_custom_call.1']
    #allocation5 [shape = 'u8[8192]{0}', space=vmem, size = 0x2000, scoped, tag = 'input window, operand 1, single buffered']
    #allocation6 [shape = 's32[1]{0}', space=sflag, size = 0x4, scoped, tag = 'scoped memory for tpu_custom_call.1']
    #allocation7 [shape = 'u8[8192]{0}', space=vmem, size = 0x2000, scoped, tag = 'input window, operand 4, single buffered']
    #allocation8 [shape = 'u8[8192]{0}', space=vmem, size = 0x2000, scoped, tag = 'input window, operand 6, single buffered']
    #allocation9 [shape = 's32[1]{0}', space=sflag, size = 0x4, scoped, tag = 'scoped memory for tpu_custom_call.1']
    #allocation10 [shape = 'u8[8192]{0}', space=vmem, size = 0x2000, scoped, tag = 'output window, operand 0']
    %15 = vsyncpa [#allocation3], 0
    %s16 = scalar_lea.sflag [#allocation3], 1
    %17 = vsyncpa %s16, 0
    %18 = vsyncpa [#allocation6], 0
    %19 = vsyncpa [#allocation9], 0
    %20 = vsyncpa [#allocation4], 0
    %s21 = scalar_lea.sflag [#allocation4], 1
    %22 = vsyncpa %s21, 0
    loop: start=0, step=1, limit=4
    $region2: #{tpu_custom_call.1} parent=1 // loop_pre_header
      _
    $region3: #{tpu_custom_call.1} parent=1 // loop_header
      %s24 = sphi 0, %s28
      %p25 = scmp.ge.s32.totalorder %s24, 4
      %s34 = sphi 0, %s36
      %s37 = sphi 0, %s34
      %s38 = sphi 0, %s37
      %s54 = sphi 0, %s38
      %s58 = sphi 0, %s58
      %s60 = sphi 0, %s58
      %s61 = sphi 0, %s60
      %s75 = sphi 0, %s61
      %s79 = sphi 0, %s79
      %s81 = sphi 0, %s79
      %s82 = sphi 0, %s81
      %s96 = sphi 0, %s82
      %s100 = sphi 0, %s100
      %s102 = sphi 0, %s100
      %s103 = sphi 0, %s102
      %s117 = sphi 0, %s103
      %s121 = sphi 0, %s121
      %s123 = sphi 0, %s121
      %s124 = sphi 0, %s123
      %s138 = sphi 0, %s124
      %s142 = sphi 0, %s142
      %s144 = sphi 0, %s142
      %s145 = sphi 0, %s144
      %s159 = sphi 0, %s145
      %s163 = sphi 0, %s163
      %s165 = sphi 0, %s163
      %s166 = sphi 0, %s165
      %s180 = sphi 0, %s166
      %s184 = sphi 0, %s184
      %s186 = sphi 0, %s184
      %s187 = sphi 0, %s186
      %s201 = sphi 0, %s187
      %s205 = sphi 0, %s205
      %s207 = sphi 0, %s205
      %s208 = sphi 0, %s207
      %s222 = sphi 0, %s208
      %s226 = sphi 0, %s226
      %s228 = sphi 0, %s226
      %s229 = sphi 0, %s228
      %s243 = sphi 0, %s229
      %s249 = sphi 0, %s251
      %s252 = sphi 0, %s249
      %s253 = sphi 0, %s252
      %s269 = sphi 0, %s253
    $region4: #{tpu_custom_call.1} parent=1 // loop_header_branch
      %27 = sbr.rel (%p25) target = $region8
    $region5: #{tpu_custom_call.1} parent=1 // loop_body
      %s29 = ssub.s32 %s24, 1
      %s30 = ssub.s32 %s24, 2
      %s31 = sadd.s32 %s24, 1
      %s32 = ssub.s32 %s24, %s31
      %p33 = scmp.eq.s32.totalorder %s32, 0
      %s35 = sadd.s32 %s34, 1
      %s36 = scalar_select %p33, %s34, %s35
      %p39 = pneg %p33
      %p40 = scmp.eq.s32.totalorder %s24, 1
      %p41 = por %p39, %p40
      %p42 = scmp.ne.s32.totalorder %s34, %s37
      %p43 = scmp.eq.s32.totalorder %s24, 0
      %p44 = por %p42, %p43
      %p45 = scmp.ne.s32.totalorder %s34, %s37
      %p46 = scmp.eq.s32.totalorder %s29, 1
      %p47 = por %p45, %p46
      %p48 = scmp.ne.s32.totalorder %s37, %s38
      %p49 = scmp.eq.s32.totalorder %s29, 0
      %p50 = por %p48, %p49
      %p51 = scmp.ne.s32.totalorder %s37, %s38
      %p52 = scmp.eq.s32.totalorder %s30, 1
      %p53 = por %p51, %p52
      %p55 = scmp.ne.s32.totalorder %s38, %s54
      %p56 = scmp.eq.s32.totalorder %s30, 0
      %p57 = por %p55, %p56
      %s59 = sadd.s32 %s58, 1
      %p62 = scmp.eq.s32.totalorder %s24, 1
      %p63 = scmp.ne.s32.totalorder %s58, %s60
      %p64 = scmp.eq.s32.totalorder %s24, 0
      %p65 = por %p63, %p64
      %p66 = scmp.ne.s32.totalorder %s58, %s60
      %p67 = scmp.eq.s32.totalorder %s29, 1
      %p68 = por %p66, %p67
      %p69 = scmp.ne.s32.totalorder %s60, %s61
      %p70 = scmp.eq.s32.totalorder %s29, 0
      %p71 = por %p69, %p70
      %p72 = scmp.ne.s32.totalorder %s60, %s61
      %p73 = scmp.eq.s32.totalorder %s30, 1
      %p74 = por %p72, %p73
      %p76 = scmp.ne.s32.totalorder %s61, %s75
      %p77 = scmp.eq.s32.totalorder %s30, 0
      %p78 = por %p76, %p77
      %s80 = sadd.s32 %s79, 1
      %p83 = scmp.eq.s32.totalorder %s24, 1
      %p84 = scmp.ne.s32.totalorder %s79, %s81
      %p85 = scmp.eq.s32.totalorder %s24, 0
      %p86 = por %p84, %p85
      %p87 = scmp.ne.s32.totalorder %s79, %s81
      %p88 = scmp.eq.s32.totalorder %s29, 1
      %p89 = por %p87, %p88
      %p90 = scmp.ne.s32.totalorder %s81, %s82
      %p91 = scmp.eq.s32.totalorder %s29, 0
      %p92 = por %p90, %p91
      %p93 = scmp.ne.s32.totalorder %s81, %s82
      %p94 = scmp.eq.s32.totalorder %s30, 1
      %p95 = por %p93, %p94
      %p97 = scmp.ne.s32.totalorder %s82, %s96
      %p98 = scmp.eq.s32.totalorder %s30, 0
      %p99 = por %p97, %p98
      %s101 = sadd.s32 %s100, 1
      %p104 = scmp.eq.s32.totalorder %s24, 1
      %p105 = scmp.ne.s32.totalorder %s100, %s102
      %p106 = scmp.eq.s32.totalorder %s24, 0
      %p107 = por %p105, %p106
      %p108 = scmp.ne.s32.totalorder %s100, %s102
      %p109 = scmp.eq.s32.totalorder %s29, 1
      %p110 = por %p108, %p109
      %p111 = scmp.ne.s32.totalorder %s102, %s103
      %p112 = scmp.eq.s32.totalorder %s29, 0
      %p113 = por %p111, %p112
      %p114 = scmp.ne.s32.totalorder %s102, %s103
      %p115 = scmp.eq.s32.totalorder %s30, 1
      %p116 = por %p114, %p115
      %p118 = scmp.ne.s32.totalorder %s103, %s117
      %p119 = scmp.eq.s32.totalorder %s30, 0
      %p120 = por %p118, %p119
      %s122 = sadd.s32 %s121, 1
      %p125 = scmp.eq.s32.totalorder %s24, 1
      %p126 = scmp.ne.s32.totalorder %s121, %s123
      %p127 = scmp.eq.s32.totalorder %s24, 0
      %p128 = por %p126, %p127
      %p129 = scmp.ne.s32.totalorder %s121, %s123
      %p130 = scmp.eq.s32.totalorder %s29, 1
      %p131 = por %p129, %p130
      %p132 = scmp.ne.s32.totalorder %s123, %s124
      %p133 = scmp.eq.s32.totalorder %s29, 0
      %p134 = por %p132, %p133
      %p135 = scmp.ne.s32.totalorder %s123, %s124
      %p136 = scmp.eq.s32.totalorder %s30, 1
      %p137 = por %p135, %p136
      %p139 = scmp.ne.s32.totalorder %s124, %s138
      %p140 = scmp.eq.s32.totalorder %s30, 0
      %p141 = por %p139, %p140
      %s143 = sadd.s32 %s142, 1
      %p146 = scmp.eq.s32.totalorder %s24, 1
      %p147 = scmp.ne.s32.totalorder %s142, %s144
      %p148 = scmp.eq.s32.totalorder %s24, 0
      %p149 = por %p147, %p148
      %p150 = scmp.ne.s32.totalorder %s142, %s144
      %p151 = scmp.eq.s32.totalorder %s29, 1
      %p152 = por %p150, %p151
      %p153 = scmp.ne.s32.totalorder %s144, %s145
      %p154 = scmp.eq.s32.totalorder %s29, 0
      %p155 = por %p153, %p154
      %p156 = scmp.ne.s32.totalorder %s144, %s145
      %p157 = scmp.eq.s32.totalorder %s30, 1
      %p158 = por %p156, %p157
      %p160 = scmp.ne.s32.totalorder %s145, %s159
      %p161 = scmp.eq.s32.totalorder %s30, 0
      %p162 = por %p160, %p161
      %s164 = sadd.s32 %s163, 1
      %p167 = scmp.eq.s32.totalorder %s24, 1
      %p168 = scmp.ne.s32.totalorder %s163, %s165
      %p169 = scmp.eq.s32.totalorder %s24, 0
      %p170 = por %p168, %p169
      %p171 = scmp.ne.s32.totalorder %s163, %s165
      %p172 = scmp.eq.s32.totalorder %s29, 1
      %p173 = por %p171, %p172
      %p174 = scmp.ne.s32.totalorder %s165, %s166
      %p175 = scmp.eq.s32.totalorder %s29, 0
      %p176 = por %p174, %p175
      %p177 = scmp.ne.s32.totalorder %s165, %s166
      %p178 = scmp.eq.s32.totalorder %s30, 1
      %p179 = por %p177, %p178
      %p181 = scmp.ne.s32.totalorder %s166, %s180
      %p182 = scmp.eq.s32.totalorder %s30, 0
      %p183 = por %p181, %p182
      %s185 = sadd.s32 %s184, 1
      %p188 = scmp.eq.s32.totalorder %s24, 1
      %p189 = scmp.ne.s32.totalorder %s184, %s186
      %p190 = scmp.eq.s32.totalorder %s24, 0
      %p191 = por %p189, %p190
      %p192 = scmp.ne.s32.totalorder %s184, %s186
      %p193 = scmp.eq.s32.totalorder %s29, 1
      %p194 = por %p192, %p193
      %p195 = scmp.ne.s32.totalorder %s186, %s187
      %p196 = scmp.eq.s32.totalorder %s29, 0
      %p197 = por %p195, %p196
      %p198 = scmp.ne.s32.totalorder %s186, %s187
      %p199 = scmp.eq.s32.totalorder %s30, 1
      %p200 = por %p198, %p199
      %p202 = scmp.ne.s32.totalorder %s187, %s201
      %p203 = scmp.eq.s32.totalorder %s30, 0
      %p204 = por %p202, %p203
      %s206 = sadd.s32 %s205, 1
      %p209 = scmp.eq.s32.totalorder %s24, 1
      %p210 = scmp.ne.s32.totalorder %s205, %s207
      %p211 = scmp.eq.s32.totalorder %s24, 0
      %p212 = por %p210, %p211
      %p213 = scmp.ne.s32.totalorder %s205, %s207
      %p214 = scmp.eq.s32.totalorder %s29, 1
      %p215 = por %p213, %p214
      %p216 = scmp.ne.s32.totalorder %s207, %s208
      %p217 = scmp.eq.s32.totalorder %s29, 0
      %p218 = por %p216, %p217
      %p219 = scmp.ne.s32.totalorder %s207, %s208
      %p220 = scmp.eq.s32.totalorder %s30, 1
      %p221 = por %p219, %p220
      %p223 = scmp.ne.s32.totalorder %s208, %s222
      %p224 = scmp.eq.s32.totalorder %s30, 0
      %p225 = por %p223, %p224
      %s227 = sadd.s32 %s226, 1
      %p230 = scmp.eq.s32.totalorder %s24, 1
      %p231 = scmp.ne.s32.totalorder %s226, %s228
      %p232 = scmp.eq.s32.totalorder %s24, 0
      %p233 = por %p231, %p232
      %p234 = scmp.ne.s32.totalorder %s226, %s228
      %p235 = scmp.eq.s32.totalorder %s29, 1
      %p236 = por %p234, %p235
      %p237 = scmp.ne.s32.totalorder %s228, %s229
      %p238 = scmp.eq.s32.totalorder %s29, 0
      %p239 = por %p237, %p238
      %p240 = scmp.ne.s32.totalorder %s228, %s229
      %p241 = scmp.eq.s32.totalorder %s30, 1
      %p242 = por %p240, %p241
      %p244 = scmp.ne.s32.totalorder %s229, %s243
      %p245 = scmp.eq.s32.totalorder %s30, 0
      %p246 = por %p244, %p245
      %s247 = ssub.s32 %s24, %s31
      %p248 = scmp.eq.s32.totalorder %s247, 0
      %s250 = sadd.s32 %s249, 1
      %s251 = scalar_select %p248, %s249, %s250
      %p254 = pneg %p248
      %p255 = scmp.eq.s32.totalorder %s24, 1
      %p256 = por %p254, %p255
      %p257 = scmp.ne.s32.totalorder %s249, %s252
      %p258 = scmp.eq.s32.totalorder %s24, 0
      %p259 = por %p257, %p258
      %p260 = scmp.ne.s32.totalorder %s249, %s252
      %p261 = scmp.eq.s32.totalorder %s29, 1
      %p262 = por %p260, %p261
      %p263 = scmp.ne.s32.totalorder %s252, %s253
      %p264 = scmp.eq.s32.totalorder %s29, 0
      %p265 = por %p263, %p264
      %p266 = scmp.ne.s32.totalorder %s252, %s253
      %p267 = scmp.eq.s32.totalorder %s30, 1
      %p268 = por %p266, %p267
      %p270 = scmp.ne.s32.totalorder %s253, %s269
      %p271 = scmp.eq.s32.totalorder %s30, 0
      %p272 = por %p270, %p271
      %p273 = scmp.le.s32.totalorder 1, %s24
      %p274 = scmp.lt.s32.totalorder %s24, 3
      %p275 = pnand %p273, %p274
      %p276 = pneg %p275
      // Predicated region
      $region9: #{tpu_custom_call.1} parent=5 // pred_check
        _
      $region10: #{tpu_custom_call.1} parent=5 // pred_check_branch
        %278 = sbr.rel (%p275) target = $region12
      $region11: #{tpu_custom_call.1} parent=5 // pred_region
        %s279 = ssub.s32 %s24, 1
        // Predicated region
        $region13: #{tpu_custom_call.1} parent=11 // pred_check
          %p280 = pneg %p71
        $region14: #{tpu_custom_call.1} parent=11 // pred_check_branch
          %282 = sbr.rel (%p280) target = $region16
        $region15: #{tpu_custom_call.1} parent=11 // pred_region
          %284 = vsyncadd [#allocation6], 0
          %s285 = sshll.u32 %s1, 4
          %s286 = int_to_ptr.hbm [resolvable:$true] %s285
          %s287 = sshll.u32 [#allocation5], 4
          %s288 = int_to_ptr.vmem [resolvable:$true] %s287
          %293 = dma.hbm_to_vmem [thread:$0]  %s286, 256, %s288, [#allocation6], 64, 64, 4
        $region16: #{tpu_custom_call.1} parent=11 // pred_fallthru
          _
        // Predicated region
        $region17: #{tpu_custom_call.1} parent=11 // pred_check
          %p294 = pneg %p92
        $region18: #{tpu_custom_call.1} parent=11 // pred_check_branch
          %296 = sbr.rel (%p294) target = $region20
        $region19: #{tpu_custom_call.1} parent=11 // pred_region
          _
        $region20: #{tpu_custom_call.1} parent=11 // pred_fallthru
          _
        // Predicated region
        $region21: #{tpu_custom_call.1} parent=11 // pred_check
          %p297 = pneg %p113
        $region22: #{tpu_custom_call.1} parent=11 // pred_check_branch
          %299 = sbr.rel (%p297) target = $region24
        $region23: #{tpu_custom_call.1} parent=11 // pred_region
          _
        $region24: #{tpu_custom_call.1} parent=11 // pred_fallthru
          _
        // Predicated region
        $region25: #{tpu_custom_call.1} parent=11 // pred_check
          %p300 = pneg %p134
        $region26: #{tpu_custom_call.1} parent=11 // pred_check_branch
          %302 = sbr.rel (%p300) target = $region28
        $region27: #{tpu_custom_call.1} parent=11 // pred_region
          %304 = vsyncadd [#allocation6], 0
          %s305 = sshll.u32 %s4, 4
          %s306 = int_to_ptr.hbm [resolvable:$true] %s305
          %s307 = sshll.u32 [#allocation7], 4
          %s308 = int_to_ptr.vmem [resolvable:$true] %s307
          %313 = dma.hbm_to_vmem [thread:$0]  %s306, 256, %s308, [#allocation6], 64, 64, 4
        $region28: #{tpu_custom_call.1} parent=11 // pred_fallthru
          _
        // Predicated region
        $region29: #{tpu_custom_call.1} parent=11 // pred_check
          %p314 = pneg %p155
        $region30: #{tpu_custom_call.1} parent=11 // pred_check_branch
          %316 = sbr.rel (%p314) target = $region32
        $region31: #{tpu_custom_call.1} parent=11 // pred_region
          _
        $region32: #{tpu_custom_call.1} parent=11 // pred_fallthru
          _
        // Predicated region
        $region33: #{tpu_custom_call.1} parent=11 // pred_check
          %p317 = pneg %p176
        $region34: #{tpu_custom_call.1} parent=11 // pred_check_branch
          %319 = sbr.rel (%p317) target = $region36
        $region35: #{tpu_custom_call.1} parent=11 // pred_region
          %321 = vsyncadd [#allocation9], 0
          %s322 = sshll.u32 %s6, 4
          %s323 = int_to_ptr.hbm [resolvable:$true] %s322
          %s324 = sshll.u32 [#allocation8], 4
          %s325 = int_to_ptr.vmem [resolvable:$true] %s324
          %330 = dma.hbm_to_vmem [thread:$0]  %s323, 256, %s325, [#allocation9], 64, 64, 4
        $region36: #{tpu_custom_call.1} parent=11 // pred_fallthru
          _
        // Predicated region
        $region37: #{tpu_custom_call.1} parent=11 // pred_check
          %p331 = pneg %p197
        $region38: #{tpu_custom_call.1} parent=11 // pred_check_branch
          %333 = sbr.rel (%p331) target = $region40
        $region39: #{tpu_custom_call.1} parent=11 // pred_region
          _
        $region40: #{tpu_custom_call.1} parent=11 // pred_fallthru
          _
        // Predicated region
        $region41: #{tpu_custom_call.1} parent=11 // pred_check
          %p334 = pneg %p218
        $region42: #{tpu_custom_call.1} parent=11 // pred_check_branch
          %336 = sbr.rel (%p334) target = $region44
        $region43: #{tpu_custom_call.1} parent=11 // pred_region
          _
        $region44: #{tpu_custom_call.1} parent=11 // pred_fallthru
          _
        // Predicated region
        $region45: #{tpu_custom_call.1} parent=11 // pred_check
          %p337 = pneg %p239
        $region46: #{tpu_custom_call.1} parent=11 // pred_check_branch
          %339 = sbr.rel (%p337) target = $region48
        $region47: #{tpu_custom_call.1} parent=11 // pred_region
          _
        $region48: #{tpu_custom_call.1} parent=11 // pred_fallthru
          _
      $region12: #{tpu_custom_call.1} parent=5 // pred_fallthru
        _
      %p340 = scmp.lt.s32.totalorder %s24, 2
      // Predicated region
      $region49: #{tpu_custom_call.1} parent=5 // pred_check
        %p341 = pneg %p340
      $region50: #{tpu_custom_call.1} parent=5 // pred_check_branch
        %343 = sbr.rel (%p341) target = $region52
      $region51: #{tpu_custom_call.1} parent=5 // pred_region
        // Predicated region
        $region53: #{tpu_custom_call.1} parent=51 // pred_check
          %p344 = pneg %p44
        $region54: #{tpu_custom_call.1} parent=51 // pred_check_branch
          %346 = sbr.rel (%p344) target = $region56
        $region55: #{tpu_custom_call.1} parent=51 // pred_region
          %s347 = sand.u32 %s34, 1
          %s348 = scalar_lea.sflag [#allocation3], %s347
          %s349 = sand.u32 %s34, 1
          %s350 = smul.addr %s349, 16
          %s351 = scalar_lea.vmem [#allocation2], %s350
          %s352 = smul.u32 2, %s24
          %354 = vsyncadd %s348, 0
          %s355 = smul.addr %s352, 8
          %s356 = scalar_lea.hbm %s0, %s355
          %s357 = sshll.u32 %s356, 4
          %s358 = int_to_ptr.hbm [resolvable:$true] %s357
          %s359 = sshll.u32 %s351, 4
          %s360 = int_to_ptr.vmem [resolvable:$true] %s359
          %365 = dma.hbm_to_vmem [thread:$0]  %s358, 256, %s360, %s348, 128, 128, 8
        $region56: #{tpu_custom_call.1} parent=51 // pred_fallthru
          _
      $region52: #{tpu_custom_call.1} parent=5 // pred_fallthru
        _
      %p366 = scmp.le.s32.totalorder 1, %s24
      %p367 = scmp.lt.s32.totalorder %s24, 3
      %p368 = pnand %p366, %p367
      %p369 = pneg %p368
      // Predicated region
      $region57: #{tpu_custom_call.1} parent=5 // pred_check
        _
      $region58: #{tpu_custom_call.1} parent=5 // pred_check_branch
        %371 = sbr.rel (%p368) target = $region60
      $region59: #{tpu_custom_call.1} parent=5 // pred_region
        %s372 = ssub.s32 %s24, 1
        %s373 = sand.u32 %s37, 1
        %s374 = scalar_lea.sflag [#allocation3], %s373
        %s375 = sand.u32 %s37, 1
        %s376 = smul.addr %s375, 16
        %s377 = scalar_lea.vmem [#allocation2], %s376
        // Predicated region
        $region61: #{tpu_custom_call.1} parent=59 // pred_check
          %p378 = pneg %p50
        $region62: #{tpu_custom_call.1} parent=59 // pred_check_branch
          %380 = sbr.rel (%p378) target = $region64
        $region63: #{tpu_custom_call.1} parent=59 // pred_region
          %382 = dma.done %s374, 256
        $region64: #{tpu_custom_call.1} parent=59 // pred_fallthru
          _
        // Predicated region
        $region65: #{tpu_custom_call.1} parent=59 // pred_check
          %p383 = pneg %p71
        $region66: #{tpu_custom_call.1} parent=59 // pred_check_branch
          %385 = sbr.rel (%p383) target = $region68
        $region67: #{tpu_custom_call.1} parent=59 // pred_region
          %387 = dma.done [#allocation6], 256
        $region68: #{tpu_custom_call.1} parent=59 // pred_fallthru
          _
        // Predicated region
        $region69: #{tpu_custom_call.1} parent=59 // pred_check
          %p388 = pneg %p134
        $region70: #{tpu_custom_call.1} parent=59 // pred_check_branch
          %390 = sbr.rel (%p388) target = $region72
        $region71: #{tpu_custom_call.1} parent=59 // pred_region
          %392 = dma.done [#allocation6], 256
        $region72: #{tpu_custom_call.1} parent=59 // pred_fallthru
          _
        // Predicated region
        $region73: #{tpu_custom_call.1} parent=59 // pred_check
          %p393 = pneg %p176
        $region74: #{tpu_custom_call.1} parent=59 // pred_check_branch
          %395 = sbr.rel (%p393) target = $region76
        $region75: #{tpu_custom_call.1} parent=59 // pred_region
          %397 = dma.done [#allocation9], 256
        $region76: #{tpu_custom_call.1} parent=59 // pred_fallthru
          _
        %s398 = sand.u32 %s37, 1
        %s399 = scalar_lea.sflag [#allocation3], %s398
        %s400 = sand.u32 %s37, 1
        %s401 = smul.addr %s400, 16
        %s402 = scalar_lea.vmem [#allocation2], %s401
        %p403 = pneg %p50
        %p404 = pneg %p47
        %p405 = pneg %p71
        %p406 = pneg %p68
        %p407 = pneg %p92
        %p408 = pneg %p89
        %p409 = pneg %p113
        %p410 = pneg %p110
        %p411 = pneg %p134
        %p412 = pneg %p131
        %p413 = pneg %p155
        %p414 = pneg %p152
        %p415 = pneg %p176
        %p416 = pneg %p173
        %p417 = pneg %p197
        %p418 = pneg %p194
        %p419 = pneg %p218
        %p420 = pneg %p215
        %p421 = pneg %p239
        %p422 = pneg %p236
        %p423 = pneg %p265
        %p424 = pneg %p262
        %s425 = sand.u32 %s252, 1
        %s426 = scalar_lea.sflag [#allocation4], %s425
        %s427 = sand.u32 %s252, 1
        %s428 = smul.addr %s427, 8
        %s429 = scalar_lea.vmem [#allocation10], %s428
        %s430 = smul.u32 2, %s29
        %v432 = vld [vmem:[%s377] sm:$0xff]
        %v433 = vld [vmem:[%s377 + $0x8] sm:$0xff]
        %vm434 = vcmask 261120
        %v435 = vsel %vm434, %v432, 0.0
        %436 = vadd.xlane.f32.xlu0 %v435
        %v437 = vpop.xlane.xlu0 %436
        %v438 = vsel %vm434, %v433, 0.0
        %439 = vadd.xlane.f32.xlu0 %v438
        %v440 = vpop.xlane.xlu0 %439
        %v441 = vrcp.pop 32.0
        %v442 = vmul.f32 32.0, %v441
        %v443 = vsub.f32 1.0, %v442
        %v444 = vmul.f32 %v441, %v443
        %v445 = vadd.f32 %v441, %v444
        %vm446 = vweird.f32 %v441
        %v447 = vsel %vm446, %v441, %v445
        %v448 = vmul.f32 %v437, %v447
        %v449 = vmul.f32 %v440, %v447
        %v450 = vsub.f32 %v432, %v448
        %v451 = vsub.f32 %v433, %v449
        %v452 = vmul.f32 %v450, %v450
        %v453 = vmul.f32 %v451, %v451
        %v454 = vsel %vm434, %v452, 0.0
        %455 = vadd.xlane.f32.xlu0 %v454
        %v456 = vpop.xlane.xlu0 %455
        %v457 = vsel %vm434, %v453, 0.0
        %458 = vadd.xlane.f32.xlu0 %v457
        %v459 = vpop.xlane.xlu0 %458
        %v460 = vmul.f32 %v456, %v447
        %v461 = vmul.f32 %v459, %v447
        %v462 = vadd.f32 %v460, 1e-05
        %v463 = vadd.f32 %v461, 1e-05
        %v464 = vrsqrt.pop %v462
        %v465 = vmul.f32 %v464, %v462
        %v466 = vmul.f32 %v465, %v464
        %v467 = vmul.f32 0.5, %v466
        %v468 = vsub.f32 1.5, %v467
        %v469 = vmul.f32 %v464, %v468
        %vm470 = vweird.f32 %v462
        %vm471 = vweird.f32 %v464
        %vm472 = vmor %vm470, %vm471
        %v473 = vsel %vm472, %v464, %v469
        %v474 = vrsqrt.pop %v463
        %v475 = vmul.f32 %v474, %v463
        %v476 = vmul.f32 %v475, %v474
        %v477 = vmul.f32 0.5, %v476
        %v478 = vsub.f32 1.5, %v477
        %v479 = vmul.f32 %v474, %v478
        %vm480 = vweird.f32 %v463
        %vm481 = vweird.f32 %v474
        %vm482 = vmor %vm480, %vm481
        %v483 = vsel %vm482, %v474, %v479
        %v484 = vmul.f32 %v450, %v473
        %v485 = vmul.f32 %v451, %v483
        %v486 = vld [vmem:[%s2] sm:$0x1]
        %v488 = vperm.slane %v486, 0
        %v490 = vmul.f32 %v484, %v488
        %v491 = vmul.f32 %v485, %v488
        %v492 = vld [vmem:[%s3] sm:$0x1]
        %v494 = vperm.slane %v492, 0
        %v496 = vadd.f32 %v490, %v494
        %v497 = vadd.f32 %v491, %v494
        %v498 = vpack.c.bf16 %v497, %v496
        %v499 = vld [vmem:[#allocation7] sm:$0xf]
        %v500 = vld [vmem:[#allocation7 + $0x4] sm:$0xf]
        %v501 = vld [vmem:[#allocation7 + $0x8] sm:$0xf]
        %v502 = vld [vmem:[#allocation7 + $0xc] sm:$0xf]
        %v503 = vld [vmem:[%s5] sm:$0x1]
        %v505 = vperm.slane %v503, 0
        %v511 = vunpack.c.l.b16 %v499
        %v512 = vunpack.c.l.b16 %v500
        %v513 = vunpack.c.l.b16 %v501
        %v514 = vunpack.c.l.b16 %v502
        %v515 = vpack.c.b16 %v512, %v511
        %v516 = vpack.c.b16 %v514, %v513
        %v520 = vsel %vm434, %v498, 0
        %522 = vmatpush.bf16.msra.mxu0 0
        %523 = vmatpush.bf16.msra.mxu0 0
        %524 = vmatpush.bf16.msra.mxu0 0
        %525 = vmatpush.bf16.msra.mxu0 0
        %526 = vmatpush.bf16.msra.mxu0 0
        %527 = vmatpush.bf16.msra.mxu0 0
        %528 = vmatpush.bf16.msra.mxu0 %v516
        %529 = vmatpush.bf16.msra.mxu0 %v515
        %530 = vmatmul.bf16.gmra.mxu0 %v520
        %v531 = vpop.f32.mrf.mxu0
        %v532 = vadd.f32 %v505, %v531
        %v533 = vpop.f32.mrf.mxu0
        %v534 = vadd.f32 %v505, %v533
        %535 = vdwg.mxu0
        %v536 = vld [vmem:[#allocation5] sm:$0xf]
        %v537 = vld [vmem:[#allocation5 + $0x4] sm:$0xf]
        %v538 = vld [vmem:[#allocation5 + $0x8] sm:$0xf]
        %v539 = vld [vmem:[#allocation5 + $0xc] sm:$0xf]
        %v540 = vld [vmem:[#allocation8] sm:$0xf]
        %v541 = vld [vmem:[#allocation8 + $0x4] sm:$0xf]
        %v542 = vld [vmem:[#allocation8 + $0x8] sm:$0xf]
        %v543 = vld [vmem:[#allocation8 + $0xc] sm:$0xf]
        %v544 = vld [vmem:[%s7] sm:$0x1]
        %v545 = vld [vmem:[%s8] sm:$0x1]
        %v546 = vld [vmem:[%s9] sm:$0x1]
        %549 = vrot.lane.b32.xlu0 %v532, 120
        %v550 = vpop.permute.xlu0 %549
        %551 = vrot.lane.b32.xlu0 %v534, 120
        %v552 = vpop.permute.xlu0 %551
        %555 = vrot.lane.b32.xlu0 %v532, 112
        %v556 = vpop.permute.xlu0 %555
        %557 = vrot.lane.b32.xlu0 %v534, 112
        %v558 = vpop.permute.xlu0 %557
        %561 = vrot.lane.b32.xlu0 %v532, 104
        %v562 = vpop.permute.xlu0 %561
        %563 = vrot.lane.b32.xlu0 %v534, 104
        %v564 = vpop.permute.xlu0 %563
        %v567 = vrot.slane %v556, 4
        %vm568 = vcmask 1047556
        %v569 = vsel %vm568, %v567, %v532
        %v570 = vrot.slane %v532, 4
        %v571 = vsel %vm568, %v556, %v570
        %v573 = vunpack.c.l.s4 1983009808
        %v574 = vunpack.c.0.s8 %v573
        %v575 = vperm.slane %v569, %v574
        %v577 = vunpack.c.l.s4 1983009808
        %v578 = vunpack.c.0.s8 %v577
        %v579 = vperm.slane %v571, %v578
        %v580 = vrot.slane %v562, 4
        %v581 = vsel %vm568, %v580, %v550
        %v582 = vrot.slane %v550, 4
        %v583 = vsel %vm568, %v562, %v582
        %v585 = vunpack.c.l.s4 1983009808
        %v586 = vunpack.c.0.s8 %v585
        %v587 = vperm.slane %v581, %v586
        %v589 = vunpack.c.l.s4 1983009808
        %v590 = vunpack.c.0.s8 %v589
        %v591 = vperm.slane %v583, %v590
        %v592 = vrot.slane %v587, 4
        %v593 = vsel %vm568, %v592, %v575
        %v594 = vrot.slane %v575, 4
        %v595 = vsel %vm568, %v587, %v594
        %v597 = vunpack.c.l.s4 1934713408
        %v598 = vunpack.c.0.s8 %v597
        %v599 = vperm.slane %v593, %v598
        %v601 = vunpack.c.l.s4 1934713408
        %v602 = vunpack.c.0.s8 %v601
        %v603 = vperm.slane %v595, %v602
        %v604 = vrot.slane %v591, 4
        %v605 = vsel %vm568, %v604, %v579
        %v606 = vrot.slane %v579, 4
        %v607 = vsel %vm568, %v591, %v606
        %v609 = vunpack.c.l.s4 1934713408
        %v610 = vunpack.c.0.s8 %v609
        %v611 = vperm.slane %v605, %v610
        %v613 = vunpack.c.l.s4 1934713408
        %v614 = vunpack.c.0.s8 %v613
        %v615 = vperm.slane %v607, %v614
        %v616 = vrot.slane %v599, 4
        %v617 = vsel %vm568, 0.0, %v616
        %v618 = vrot.slane %v603, 4
        %v619 = vsel %vm568, 0.0, %v618
        %v620 = vrot.slane %v611, 4
        %v621 = vsel %vm568, 0.0, %v620
        %v622 = vrot.slane %v615, 4
        %v623 = vsel %vm568, 0.0, %v622
        %v624 = vrot.slane %v558, 4
        %v625 = vsel %vm568, %v624, %v534
        %v626 = vrot.slane %v534, 4
        %v627 = vsel %vm568, %v558, %v626
        %v629 = vunpack.c.l.s4 1983009808
        %v630 = vunpack.c.0.s8 %v629
        %v631 = vperm.slane %v625, %v630
        %v633 = vunpack.c.l.s4 1983009808
        %v634 = vunpack.c.0.s8 %v633
        %v635 = vperm.slane %v627, %v634
        %v636 = vrot.slane %v564, 4
        %v637 = vsel %vm568, %v636, %v552
        %v638 = vrot.slane %v552, 4
        %v639 = vsel %vm568, %v564, %v638
        %v641 = vunpack.c.l.s4 1983009808
        %v642 = vunpack.c.0.s8 %v641
        %v643 = vperm.slane %v637, %v642
        %v645 = vunpack.c.l.s4 1983009808
        %v646 = vunpack.c.0.s8 %v645
        %v647 = vperm.slane %v639, %v646
        %v648 = vrot.slane %v643, 4
        %v649 = vsel %vm568, %v648, %v631
        %v650 = vrot.slane %v631, 4
        %v651 = vsel %vm568, %v643, %v650
        %v653 = vunpack.c.l.s4 1934713408
        %v654 = vunpack.c.0.s8 %v653
        %v655 = vperm.slane %v649, %v654
        %v657 = vunpack.c.l.s4 1934713408
        %v658 = vunpack.c.0.s8 %v657
        %v659 = vperm.slane %v651, %v658
        %v660 = vrot.slane %v647, 4
        %v661 = vsel %vm568, %v660, %v635
        %v662 = vrot.slane %v635, 4
        %v663 = vsel %vm568, %v647, %v662
        %v665 = vunpack.c.l.s4 1934713408
        %v666 = vunpack.c.0.s8 %v665
        %v667 = vperm.slane %v661, %v666
        %v669 = vunpack.c.l.s4 1934713408
        %v670 = vunpack.c.0.s8 %v669
        %v671 = vperm.slane %v663, %v670
        %v672 = vrot.slane %v655, 4
        %v673 = vsel %vm568, 0.0, %v672
        %v674 = vrot.slane %v659, 4
        %v675 = vsel %vm568, 0.0, %v674
        %v676 = vrot.slane %v667, 4
        %v677 = vsel %vm568, 0.0, %v676
        %v678 = vrot.slane %v671, 4
        %v679 = vsel %vm568, 0.0, %v678
        %v680 = vsel %vm568, %v618, %v599
        %v682 = vunpack.c.l.s4 1983009808
        %v683 = vunpack.c.0.s8 %v682
        %v684 = vperm.slane %v680, %v683
        %v685 = vrot.slane %v619, 4
        %v686 = vsel %vm568, %v685, %v617
        %v688 = vunpack.c.l.s4 1983009808
        %v689 = vunpack.c.0.s8 %v688
        %v690 = vperm.slane %v686, %v689
        %v691 = vsel %vm568, %v622, %v611
        %v693 = vunpack.c.l.s4 1983009808
        %v694 = vunpack.c.0.s8 %v693
        %v695 = vperm.slane %v691, %v694
        %v696 = vrot.slane %v623, 4
        %v697 = vsel %vm568, %v696, %v621
        %v699 = vunpack.c.l.s4 1983009808
        %v700 = vunpack.c.0.s8 %v699
        %v701 = vperm.slane %v697, %v700
        %v702 = vrot.slane %v690, 4
        %v703 = vsel %vm568, %v702, %v684
        %v704 = vrot.slane %v684, 4
        %v705 = vsel %vm568, %v690, %v704
        %v707 = vunpack.c.l.s4 1934713408
        %v708 = vunpack.c.0.s8 %v707
        %v709 = vperm.slane %v703, %v708
        %v711 = vunpack.c.l.s4 1934713408
        %v712 = vunpack.c.0.s8 %v711
        %v713 = vperm.slane %v705, %v712
        %v714 = vrot.slane %v701, 4
        %v715 = vsel %vm568, %v714, %v695
        %v716 = vrot.slane %v695, 4
        %v717 = vsel %vm568, %v701, %v716
        %v719 = vunpack.c.l.s4 1934713408
        %v720 = vunpack.c.0.s8 %v719
        %v721 = vperm.slane %v715, %v720
        %v723 = vunpack.c.l.s4 1934713408
        %v724 = vunpack.c.0.s8 %v723
        %v725 = vperm.slane %v717, %v724
        %v726 = vrot.slane %v721, 4
        %v727 = vsel %vm568, %v726, %v709
        %v728 = vrot.slane %v709, 4
        %v729 = vsel %vm568, %v721, %v728
        %v730 = vrot.slane %v725, 4
        %v731 = vsel %vm568, %v730, %v713
        %v732 = vrot.slane %v713, 4
        %v733 = vsel %vm568, %v725, %v732
        %v734 = vsel %vm568, %v674, %v655
        %v736 = vunpack.c.l.s4 1983009808
        %v737 = vunpack.c.0.s8 %v736
        %v738 = vperm.slane %v734, %v737
        %v739 = vrot.slane %v675, 4
        %v740 = vsel %vm568, %v739, %v673
        %v742 = vunpack.c.l.s4 1983009808
        %v743 = vunpack.c.0.s8 %v742
        %v744 = vperm.slane %v740, %v743
        %v745 = vsel %vm568, %v678, %v667
        %v747 = vunpack.c.l.s4 1983009808
        %v748 = vunpack.c.0.s8 %v747
        %v749 = vperm.slane %v745, %v748
        %v750 = vrot.slane %v679, 4
        %v751 = vsel %vm568, %v750, %v677
        %v753 = vunpack.c.l.s4 1983009808
        %v754 = vunpack.c.0.s8 %v753
        %v755 = vperm.slane %v751, %v754
        %v756 = vrot.slane %v744, 4
        %v757 = vsel %vm568, %v756, %v738
        %v758 = vrot.slane %v738, 4
        %v759 = vsel %vm568, %v744, %v758
        %v761 = vunpack.c.l.s4 1934713408
        %v762 = vunpack.c.0.s8 %v761
        %v763 = vperm.slane %v757, %v762
        %v765 = vunpack.c.l.s4 1934713408
        %v766 = vunpack.c.0.s8 %v765
        %v767 = vperm.slane %v759, %v766
        %v768 = vrot.slane %v755, 4
        %v769 = vsel %vm568, %v768, %v749
        %v770 = vrot.slane %v749, 4
        %v771 = vsel %vm568, %v755, %v770
        %v773 = vunpack.c.l.s4 1934713408
        %v774 = vunpack.c.0.s8 %v773
        %v775 = vperm.slane %v769, %v774
        %v777 = vunpack.c.l.s4 1934713408
        %v778 = vunpack.c.0.s8 %v777
        %v779 = vperm.slane %v771, %v778
        %v780 = vrot.slane %v775, 4
        %v781 = vsel %vm568, %v780, %v763
        %v782 = vrot.slane %v763, 4
        %v783 = vsel %vm568, %v775, %v782
        %v784 = vrot.slane %v779, 4
        %v785 = vsel %vm568, %v784, %v767
        %v786 = vrot.slane %v767, 4
        %v787 = vsel %vm568, %v779, %v786
        %v788 = vpack.c.bf16 %v727, %v727
        %v789 = vpack.c.bf16 %v781, %v781
        %v790 = vpack.c.bf16 %v729, %v729
        %v791 = vpack.c.bf16 %v783, %v783
        %v792 = vpack.c.bf16 %v731, %v731
        %v793 = vpack.c.bf16 %v785, %v785
        %v794 = vpack.c.bf16 %v733, %v733
        %v795 = vpack.c.bf16 %v787, %v787
        %796 = vrot.lane.b32.xlu0 %v532, 96
        %v797 = vpop.permute.xlu0 %796
        %798 = vrot.lane.b32.xlu0 %v534, 96
        %v799 = vpop.permute.xlu0 %798
        %800 = vrot.lane.b32.xlu0 %v550, 96
        %v801 = vpop.permute.xlu0 %800
        %802 = vrot.lane.b32.xlu0 %v552, 96
        %v803 = vpop.permute.xlu0 %802
        %804 = vrot.lane.b32.xlu0 %v556, 96
        %v805 = vpop.permute.xlu0 %804
        %806 = vrot.lane.b32.xlu0 %v558, 96
        %v807 = vpop.permute.xlu0 %806
        %808 = vrot.lane.b32.xlu0 %v562, 96
        %v809 = vpop.permute.xlu0 %808
        %810 = vrot.lane.b32.xlu0 %v564, 96
        %v811 = vpop.permute.xlu0 %810
        %v820 = vrot.slane %v805, 4
        %v821 = vsel %vm568, %v820, %v797
        %v822 = vrot.slane %v797, 4
        %v823 = vsel %vm568, %v805, %v822
        %v825 = vunpack.c.l.s4 1983009808
        %v826 = vunpack.c.0.s8 %v825
        %v827 = vperm.slane %v821, %v826
        %v829 = vunpack.c.l.s4 1983009808
        %v830 = vunpack.c.0.s8 %v829
        %v831 = vperm.slane %v823, %v830
        %v832 = vrot.slane %v809, 4
        %v833 = vsel %vm568, %v832, %v801
        %v834 = vrot.slane %v801, 4
        %v835 = vsel %vm568, %v809, %v834
        %v837 = vunpack.c.l.s4 1983009808
        %v838 = vunpack.c.0.s8 %v837
        %v839 = vperm.slane %v833, %v838
        %v841 = vunpack.c.l.s4 1983009808
        %v842 = vunpack.c.0.s8 %v841
        %v843 = vperm.slane %v835, %v842
        %v844 = vrot.slane %v839, 4
        %v845 = vsel %vm568, %v844, %v827
        %v846 = vrot.slane %v827, 4
        %v847 = vsel %vm568, %v839, %v846
        %v849 = vunpack.c.l.s4 1934713408
        %v850 = vunpack.c.0.s8 %v849
        %v851 = vperm.slane %v845, %v850
        %v853 = vunpack.c.l.s4 1934713408
        %v854 = vunpack.c.0.s8 %v853
        %v855 = vperm.slane %v847, %v854
        %v856 = vrot.slane %v843, 4
        %v857 = vsel %vm568, %v856, %v831
        %v858 = vrot.slane %v831, 4
        %v859 = vsel %vm568, %v843, %v858
        %v861 = vunpack.c.l.s4 1934713408
        %v862 = vunpack.c.0.s8 %v861
        %v863 = vperm.slane %v857, %v862
        %v865 = vunpack.c.l.s4 1934713408
        %v866 = vunpack.c.0.s8 %v865
        %v867 = vperm.slane %v859, %v866
        %v868 = vrot.slane %v851, 4
        %v869 = vsel %vm568, 0.0, %v868
        %v870 = vrot.slane %v855, 4
        %v871 = vsel %vm568, 0.0, %v870
        %v872 = vrot.slane %v863, 4
        %v873 = vsel %vm568, 0.0, %v872
        %v874 = vrot.slane %v867, 4
        %v875 = vsel %vm568, 0.0, %v874
        %v876 = vrot.slane %v807, 4
        %v877 = vsel %vm568, %v876, %v799
        %v878 = vrot.slane %v799, 4
        %v879 = vsel %vm568, %v807, %v878
        %v881 = vunpack.c.l.s4 1983009808
        %v882 = vunpack.c.0.s8 %v881
        %v883 = vperm.slane %v877, %v882
        %v885 = vunpack.c.l.s4 1983009808
        %v886 = vunpack.c.0.s8 %v885
        %v887 = vperm.slane %v879, %v886
        %v888 = vrot.slane %v811, 4
        %v889 = vsel %vm568, %v888, %v803
        %v890 = vrot.slane %v803, 4
        %v891 = vsel %vm568, %v811, %v890
        %v893 = vunpack.c.l.s4 1983009808
        %v894 = vunpack.c.0.s8 %v893
        %v895 = vperm.slane %v889, %v894
        %v897 = vunpack.c.l.s4 1983009808
        %v898 = vunpack.c.0.s8 %v897
        %v899 = vperm.slane %v891, %v898
        %v900 = vrot.slane %v895, 4
        %v901 = vsel %vm568, %v900, %v883
        %v902 = vrot.slane %v883, 4
        %v903 = vsel %vm568, %v895, %v902
        %v905 = vunpack.c.l.s4 1934713408
        %v906 = vunpack.c.0.s8 %v905
        %v907 = vperm.slane %v901, %v906
        %v909 = vunpack.c.l.s4 1934713408
        %v910 = vunpack.c.0.s8 %v909
        %v911 = vperm.slane %v903, %v910
        %v912 = vrot.slane %v899, 4
        %v913 = vsel %vm568, %v912, %v887
        %v914 = vrot.slane %v887, 4
        %v915 = vsel %vm568, %v899, %v914
        %v917 = vunpack.c.l.s4 1934713408
        %v918 = vunpack.c.0.s8 %v917
        %v919 = vperm.slane %v913, %v918
        %v921 = vunpack.c.l.s4 1934713408
        %v922 = vunpack.c.0.s8 %v921
        %v923 = vperm.slane %v915, %v922
        %v924 = vrot.slane %v907, 4
        %v925 = vsel %vm568, 0.0, %v924
        %v926 = vrot.slane %v911, 4
        %v927 = vsel %vm568, 0.0, %v926
        %v928 = vrot.slane %v919, 4
        %v929 = vsel %vm568, 0.0, %v928
        %v930 = vrot.slane %v923, 4
        %v931 = vsel %vm568, 0.0, %v930
        %v932 = vsel %vm568, %v870, %v851
        %v934 = vunpack.c.l.s4 1983009808
        %v935 = vunpack.c.0.s8 %v934
        %v936 = vperm.slane %v932, %v935
        %v937 = vrot.slane %v871, 4
        %v938 = vsel %vm568, %v937, %v869
        %v940 = vunpack.c.l.s4 1983009808
        %v941 = vunpack.c.0.s8 %v940
        %v942 = vperm.slane %v938, %v941
        %v943 = vsel %vm568, %v874, %v863
        %v945 = vunpack.c.l.s4 1983009808
        %v946 = vunpack.c.0.s8 %v945
        %v947 = vperm.slane %v943, %v946
        %v948 = vrot.slane %v875, 4
        %v949 = vsel %vm568, %v948, %v873
        %v951 = vunpack.c.l.s4 1983009808
        %v952 = vunpack.c.0.s8 %v951
        %v953 = vperm.slane %v949, %v952
        %v954 = vrot.slane %v942, 4
        %v955 = vsel %vm568, %v954, %v936
        %v956 = vrot.slane %v936, 4
        %v957 = vsel %vm568, %v942, %v956
        %v959 = vunpack.c.l.s4 1934713408
        %v960 = vunpack.c.0.s8 %v959
        %v961 = vperm.slane %v955, %v960
        %v963 = vunpack.c.l.s4 1934713408
        %v964 = vunpack.c.0.s8 %v963
        %v965 = vperm.slane %v957, %v964
        %v966 = vrot.slane %v953, 4
        %v967 = vsel %vm568, %v966, %v947
        %v968 = vrot.slane %v947, 4
        %v969 = vsel %vm568, %v953, %v968
        %v971 = vunpack.c.l.s4 1934713408
        %v972 = vunpack.c.0.s8 %v971
        %v973 = vperm.slane %v967, %v972
        %v975 = vunpack.c.l.s4 1934713408
        %v976 = vunpack.c.0.s8 %v975
        %v977 = vperm.slane %v969, %v976
        %v978 = vrot.slane %v973, 4
        %v979 = vsel %vm568, %v978, %v961
        %v980 = vrot.slane %v961, 4
        %v981 = vsel %vm568, %v973, %v980
        %v982 = vrot.slane %v977, 4
        %v983 = vsel %vm568, %v982, %v965
        %v984 = vrot.slane %v965, 4
        %v985 = vsel %vm568, %v977, %v984
        %v986 = vsel %vm568, %v926, %v907
        %v988 = vunpack.c.l.s4 1983009808
        %v989 = vunpack.c.0.s8 %v988
        %v990 = vperm.slane %v986, %v989
        %v991 = vrot.slane %v927, 4
        %v992 = vsel %vm568, %v991, %v925
        %v994 = vunpack.c.l.s4 1983009808
        %v995 = vunpack.c.0.s8 %v994
        %v996 = vperm.slane %v992, %v995
        %v997 = vsel %vm568, %v930, %v919
        %v999 = vunpack.c.l.s4 1983009808
        %v1000 = vunpack.c.0.s8 %v999
        %v1001 = vperm.slane %v997, %v1000
        %v1002 = vrot.slane %v931, 4
        %v1003 = vsel %vm568, %v1002, %v929
        %v1005 = vunpack.c.l.s4 1983009808
        %v1006 = vunpack.c.0.s8 %v1005
        %v1007 = vperm.slane %v1003, %v1006
        %v1008 = vrot.slane %v996, 4
        %v1009 = vsel %vm568, %v1008, %v990
        %v1010 = vrot.slane %v990, 4
        %v1011 = vsel %vm568, %v996, %v1010
        %v1013 = vunpack.c.l.s4 1934713408
        %v1014 = vunpack.c.0.s8 %v1013
        %v1015 = vperm.slane %v1009, %v1014
        %v1017 = vunpack.c.l.s4 1934713408
        %v1018 = vunpack.c.0.s8 %v1017
        %v1019 = vperm.slane %v1011, %v1018
        %v1020 = vrot.slane %v1007, 4
        %v1021 = vsel %vm568, %v1020, %v1001
        %v1022 = vrot.slane %v1001, 4
        %v1023 = vsel %vm568, %v1007, %v1022
        %v1025 = vunpack.c.l.s4 1934713408
        %v1026 = vunpack.c.0.s8 %v1025
        %v1027 = vperm.slane %v1021, %v1026
        %v1029 = vunpack.c.l.s4 1934713408
        %v1030 = vunpack.c.0.s8 %v1029
        %v1031 = vperm.slane %v1023, %v1030
        %v1032 = vrot.slane %v1027, 4
        %v1033 = vsel %vm568, %v1032, %v1015
        %v1034 = vrot.slane %v1015, 4
        %v1035 = vsel %vm568, %v1027, %v1034
        %v1036 = vrot.slane %v1031, 4
        %v1037 = vsel %vm568, %v1036, %v1019
        %v1038 = vrot.slane %v1019, 4
        %v1039 = vsel %vm568, %v1031, %v1038
        %v1040 = vpack.c.bf16 %v979, %v979
        %v1041 = vpack.c.bf16 %v1033, %v1033
        %v1042 = vpack.c.bf16 %v981, %v981
        %v1043 = vpack.c.bf16 %v1035, %v1035
        %v1044 = vpack.c.bf16 %v983, %v983
        %v1045 = vpack.c.bf16 %v1037, %v1037
        %v1046 = vpack.c.bf16 %v985, %v985
        %v1047 = vpack.c.bf16 %v1039, %v1039
        %v1050 = vunpack.c.l.b16 %v788
        %v1051 = vunpack.c.l.b16 %v789
        %v1052 = vpack.c.b16 %v1051, %v1050
        %vm1053 = vcmask 64512
        %v1055 = vsel %vm1053, %v536, 0
        %v1058 = vsel %vm1053, %v1052, 0
        %1060 = vmatpush.bf16.xpose.msra.mxu0 0
        %1061 = vmatpush.bf16.xpose.msra.mxu0 0
        %1062 = vmatpush.bf16.xpose.msra.mxu0 0
        %1063 = vmatpush.bf16.xpose.msra.mxu0 0
        %1064 = vmatpush.bf16.xpose.msra.mxu0 0
        %1065 = vmatpush.bf16.xpose.msra.mxu0 0
        %1066 = vmatpush.bf16.xpose.msra.mxu0 0
        %1067 = vmatpush.bf16.xpose.msra.mxu0 %v1058
        %1068 = vmatmul.bf16.gmra.mxu0 %v1055
        %v1069 = vpop.f32.mrf.mxu0
        %v1070 = vadd.f32 0.0, %v1069
        %v1071 = vpop.f32.mrf.mxu0
        %1072 = vdwg.mxu0
        %v1075 = vunpack.c.l.b16 %v790
        %v1076 = vunpack.c.l.b16 %v791
        %v1077 = vpack.c.b16 %v1076, %v1075
        %v1079 = vsel %vm1053, %v537, 0
        %v1082 = vsel %vm1053, %v1077, 0
        %1084 = vmatpush.bf16.xpose.msra.mxu0 0
        %1085 = vmatpush.bf16.xpose.msra.mxu0 0
        %1086 = vmatpush.bf16.xpose.msra.mxu0 0
        %1087 = vmatpush.bf16.xpose.msra.mxu0 0
        %1088 = vmatpush.bf16.xpose.msra.mxu0 0
        %1089 = vmatpush.bf16.xpose.msra.mxu0 0
        %1090 = vmatpush.bf16.xpose.msra.mxu0 0
        %1091 = vmatpush.bf16.xpose.msra.mxu0 %v1082
        %1092 = vmatmul.bf16.gmra.mxu0 %v1079
        %v1093 = vpop.f32.mrf.mxu0
        %v1094 = vadd.f32 0.0, %v1093
        %v1095 = vpop.f32.mrf.mxu0
        %1096 = vdwg.mxu0
        %v1099 = vunpack.c.l.b16 %v792
        %v1100 = vunpack.c.l.b16 %v793
        %v1101 = vpack.c.b16 %v1100, %v1099
        %v1103 = vsel %vm1053, %v538, 0
        %v1106 = vsel %vm1053, %v1101, 0
        %1108 = vmatpush.bf16.xpose.msra.mxu0 0
        %1109 = vmatpush.bf16.xpose.msra.mxu0 0
        %1110 = vmatpush.bf16.xpose.msra.mxu0 0
        %1111 = vmatpush.bf16.xpose.msra.mxu0 0
        %1112 = vmatpush.bf16.xpose.msra.mxu0 0
        %1113 = vmatpush.bf16.xpose.msra.mxu0 0
        %1114 = vmatpush.bf16.xpose.msra.mxu0 0
        %1115 = vmatpush.bf16.xpose.msra.mxu0 %v1106
        %1116 = vmatmul.bf16.gmra.mxu0 %v1103
        %v1117 = vpop.f32.mrf.mxu0
        %v1118 = vadd.f32 0.0, %v1117
        %v1119 = vpop.f32.mrf.mxu0
        %1120 = vdwg.mxu0
        %v1123 = vunpack.c.l.b16 %v794
        %v1124 = vunpack.c.l.b16 %v795
        %v1125 = vpack.c.b16 %v1124, %v1123
        %v1127 = vsel %vm1053, %v539, 0
        %v1130 = vsel %vm1053, %v1125, 0
        %1132 = vmatpush.bf16.xpose.msra.mxu0 0
        %1133 = vmatpush.bf16.xpose.msra.mxu0 0
        %1134 = vmatpush.bf16.xpose.msra.mxu0 0
        %1135 = vmatpush.bf16.xpose.msra.mxu0 0
        %1136 = vmatpush.bf16.xpose.msra.mxu0 0
        %1137 = vmatpush.bf16.xpose.msra.mxu0 0
        %1138 = vmatpush.bf16.xpose.msra.mxu0 0
        %1139 = vmatpush.bf16.xpose.msra.mxu0 %v1130
        %1140 = vmatmul.bf16.gmra.mxu0 %v1127
        %v1141 = vpop.f32.mrf.mxu0
        %v1142 = vadd.f32 0.0, %v1141
        %v1143 = vpop.f32.mrf.mxu0
        %1144 = vdwg.mxu0
        %vm1145 = vcmask 130048
        %v1146 = vsel %vm1145, %v1070, -inf
        %1147 = vmax.xlane.f32.xlu0 %v1146
        %v1148 = vpop.xlane.xlu0 %1147
        %v1149 = vsel %vm1145, %v1094, -inf
        %1150 = vmax.xlane.f32.xlu0 %v1149
        %v1151 = vpop.xlane.xlu0 %1150
        %v1152 = vsel %vm1145, %v1118, -inf
        %1153 = vmax.xlane.f32.xlu0 %v1152
        %v1154 = vpop.xlane.xlu0 %1153
        %v1155 = vsel %vm1145, %v1142, -inf
        %1156 = vmax.xlane.f32.xlu0 %v1155
        %v1157 = vpop.xlane.xlu0 %1156
        %v1158 = vsub.f32 %v1070, %v1148
        %v1159 = vsub.f32 %v1094, %v1151
        %v1160 = vsub.f32 %v1118, %v1154
        %v1161 = vsub.f32 %v1142, %v1157
        %v1162 = vmul.f32 %v1158, 1.442695
        %v1163 = vpow.pop %v1162
        %v1164 = vmul.f32 %v1159, 1.442695
        %v1165 = vpow.pop %v1164
        %v1166 = vmul.f32 %v1160, 1.442695
        %v1167 = vpow.pop %v1166
        %v1168 = vmul.f32 %v1161, 1.442695
        %v1169 = vpow.pop %v1168
        %v1170 = vsel %vm1145, %v1163, 0.0
        %1171 = vadd.xlane.f32.xlu0 %v1170
        %v1172 = vpop.xlane.xlu0 %1171
        %v1173 = vsel %vm1145, %v1165, 0.0
        %1174 = vadd.xlane.f32.xlu0 %v1173
        %v1175 = vpop.xlane.xlu0 %1174
        %v1176 = vsel %vm1145, %v1167, 0.0
        %1177 = vadd.xlane.f32.xlu0 %v1176
        %v1178 = vpop.xlane.xlu0 %1177
        %v1179 = vsel %vm1145, %v1169, 0.0
        %1180 = vadd.xlane.f32.xlu0 %v1179
        %v1181 = vpop.xlane.xlu0 %1180
        %v1182 = vrcp.pop %v1172
        %v1183 = vrcp.pop %v1175
        %v1184 = vrcp.pop %v1178
        %v1185 = vrcp.pop %v1181
        %v1186 = vmul.f32 %v1163, %v1182
        %v1187 = vmul.f32 %v1165, %v1183
        %v1188 = vmul.f32 %v1167, %v1184
        %v1189 = vmul.f32 %v1169, %v1185
        %v1190 = vpack.c.bf16 %v1186, %v1186
        %v1191 = vpack.c.bf16 %v1187, %v1187
        %v1192 = vpack.c.bf16 %v1188, %v1188
        %v1193 = vpack.c.bf16 %v1189, %v1189
        %v1196 = vunpack.c.l.b16 %v1040
        %v1197 = vunpack.c.l.b16 %v1041
        %v1198 = vpack.c.b16 %v1197, %v1196
        %v1201 = vsel %vm1145, %v1190, 0
        %1203 = vmatpush.bf16.msra.mxu0 0
        %1204 = vmatpush.bf16.msra.mxu0 0
        %1205 = vmatpush.bf16.msra.mxu0 0
        %1206 = vmatpush.bf16.msra.mxu0 0
        %1207 = vmatpush.bf16.msra.mxu0 0
        %1208 = vmatpush.bf16.msra.mxu0 0
        %1209 = vmatpush.bf16.msra.mxu0 0
        %1210 = vmatpush.bf16.msra.mxu0 %v1198
        %1211 = vmatmul.bf16.gmra.mxu0 %v1201
        %v1212 = vpop.f32.mrf.mxu0
        %v1213 = vadd.f32 0.0, %v1212
        %v1214 = vpop.f32.mrf.mxu0
        %1215 = vdwg.mxu0
        %v1218 = vunpack.c.l.b16 %v1042
        %v1219 = vunpack.c.l.b16 %v1043
        %v1220 = vpack.c.b16 %v1219, %v1218
        %v1223 = vsel %vm1145, %v1191, 0
        %1225 = vmatpush.bf16.msra.mxu0 0
        %1226 = vmatpush.bf16.msra.mxu0 0
        %1227 = vmatpush.bf16.msra.mxu0 0
        %1228 = vmatpush.bf16.msra.mxu0 0
        %1229 = vmatpush.bf16.msra.mxu0 0
        %1230 = vmatpush.bf16.msra.mxu0 0
        %1231 = vmatpush.bf16.msra.mxu0 0
        %1232 = vmatpush.bf16.msra.mxu0 %v1220
        %1233 = vmatmul.bf16.gmra.mxu0 %v1223
        %v1234 = vpop.f32.mrf.mxu0
        %v1235 = vadd.f32 0.0, %v1234
        %v1236 = vpop.f32.mrf.mxu0
        %1237 = vdwg.mxu0
        %v1240 = vunpack.c.l.b16 %v1044
        %v1241 = vunpack.c.l.b16 %v1045
        %v1242 = vpack.c.b16 %v1241, %v1240
        %v1245 = vsel %vm1145, %v1192, 0
        %1247 = vmatpush.bf16.msra.mxu0 0
        %1248 = vmatpush.bf16.msra.mxu0 0
        %1249 = vmatpush.bf16.msra.mxu0 0
        %1250 = vmatpush.bf16.msra.mxu0 0
        %1251 = vmatpush.bf16.msra.mxu0 0
        %1252 = vmatpush.bf16.msra.mxu0 0
        %1253 = vmatpush.bf16.msra.mxu0 0
        %1254 = vmatpush.bf16.msra.mxu0 %v1242
        %1255 = vmatmul.bf16.gmra.mxu0 %v1245
        %v1256 = vpop.f32.mrf.mxu0
        %v1257 = vadd.f32 0.0, %v1256
        %v1258 = vpop.f32.mrf.mxu0
        %1259 = vdwg.mxu0
        %v1262 = vunpack.c.l.b16 %v1046
        %v1263 = vunpack.c.l.b16 %v1047
        %v1264 = vpack.c.b16 %v1263, %v1262
        %v1267 = vsel %vm1145, %v1193, 0
        %1269 = vmatpush.bf16.msra.mxu0 0
        %1270 = vmatpush.bf16.msra.mxu0 0
        %1271 = vmatpush.bf16.msra.mxu0 0
        %1272 = vmatpush.bf16.msra.mxu0 0
        %1273 = vmatpush.bf16.msra.mxu0 0
        %1274 = vmatpush.bf16.msra.mxu0 0
        %1275 = vmatpush.bf16.msra.mxu0 0
        %1276 = vmatpush.bf16.msra.mxu0 %v1264
        %1277 = vmatmul.bf16.gmra.mxu0 %v1267
        %v1278 = vpop.f32.mrf.mxu0
        %v1279 = vadd.f32 0.0, %v1278
        %v1280 = vpop.f32.mrf.mxu0
        %1281 = vdwg.mxu0
        %v1282 = vrot.slane %v1257, 4
        %v1283 = vsel %vm568, %v1282, %v1213
        %v1284 = vrot.slane %v1213, 4
        %v1285 = vsel %vm568, %v1257, %v1284
        %v1287 = vunpack.c.l.s4 1983009808
        %v1288 = vunpack.c.0.s8 %v1287
        %v1289 = vperm.slane %v1283, %v1288
        %v1291 = vunpack.c.l.s4 1983009808
        %v1292 = vunpack.c.0.s8 %v1291
        %v1293 = vperm.slane %v1285, %v1292
        %v1294 = vrot.slane %v1279, 4
        %v1295 = vsel %vm568, %v1294, %v1235
        %v1296 = vrot.slane %v1235, 4
        %v1297 = vsel %vm568, %v1279, %v1296
        %v1299 = vunpack.c.l.s4 1983009808
        %v1300 = vunpack.c.0.s8 %v1299
        %v1301 = vperm.slane %v1295, %v1300
        %v1303 = vunpack.c.l.s4 1983009808
        %v1304 = vunpack.c.0.s8 %v1303
        %v1305 = vperm.slane %v1297, %v1304
        %v1306 = vrot.slane %v1301, 4
        %v1307 = vsel %vm568, %v1306, %v1289
        %v1308 = vrot.slane %v1289, 4
        %v1309 = vsel %vm568, %v1301, %v1308
        %v1311 = vunpack.c.l.s4 1934713408
        %v1312 = vunpack.c.0.s8 %v1311
        %v1313 = vperm.slane %v1307, %v1312
        %v1315 = vunpack.c.l.s4 1934713408
        %v1316 = vunpack.c.0.s8 %v1315
        %v1317 = vperm.slane %v1309, %v1316
        %v1318 = vrot.slane %v1305, 4
        %v1319 = vsel %vm568, %v1318, %v1293
        %v1320 = vrot.slane %v1293, 4
        %v1321 = vsel %vm568, %v1305, %v1320
        %v1323 = vunpack.c.l.s4 1934713408
        %v1324 = vunpack.c.0.s8 %v1323
        %v1325 = vperm.slane %v1319, %v1324
        %v1327 = vunpack.c.l.s4 1934713408
        %v1328 = vunpack.c.0.s8 %v1327
        %v1329 = vperm.slane %v1321, %v1328
        %v1330 = vrot.slane %v1313, 4
        %v1331 = vsel %vm568, 0.0, %v1330
        %v1332 = vrot.slane %v1317, 4
        %v1333 = vsel %vm568, 0.0, %v1332
        %v1334 = vrot.slane %v1325, 4
        %v1335 = vsel %vm568, 0.0, %v1334
        %v1336 = vrot.slane %v1329, 4
        %v1337 = vsel %vm568, 0.0, %v1336
        %v1338 = vsel %vm568, %v1332, %v1313
        %v1340 = vunpack.c.l.s4 1983009808
        %v1341 = vunpack.c.0.s8 %v1340
        %v1342 = vperm.slane %v1338, %v1341
        %v1343 = vrot.slane %v1333, 4
        %v1344 = vsel %vm568, %v1343, %v1331
        %v1346 = vunpack.c.l.s4 1983009808
        %v1347 = vunpack.c.0.s8 %v1346
        %v1348 = vperm.slane %v1344, %v1347
        %v1349 = vsel %vm568, %v1336, %v1325
        %v1351 = vunpack.c.l.s4 1983009808
        %v1352 = vunpack.c.0.s8 %v1351
        %v1353 = vperm.slane %v1349, %v1352
        %v1354 = vrot.slane %v1337, 4
        %v1355 = vsel %vm568, %v1354, %v1335
        %v1357 = vunpack.c.l.s4 1983009808
        %v1358 = vunpack.c.0.s8 %v1357
        %v1359 = vperm.slane %v1355, %v1358
        %v1360 = vrot.slane %v1348, 4
        %v1361 = vsel %vm568, %v1360, %v1342
        %v1362 = vrot.slane %v1342, 4
        %v1363 = vsel %vm568, %v1348, %v1362
        %v1365 = vunpack.c.l.s4 1934713408
        %v1366 = vunpack.c.0.s8 %v1365
        %v1367 = vperm.slane %v1361, %v1366
        %v1369 = vunpack.c.l.s4 1934713408
        %v1370 = vunpack.c.0.s8 %v1369
        %v1371 = vperm.slane %v1363, %v1370
        %v1372 = vrot.slane %v1359, 4
        %v1373 = vsel %vm568, %v1372, %v1353
        %v1374 = vrot.slane %v1353, 4
        %v1375 = vsel %vm568, %v1359, %v1374
        %v1377 = vunpack.c.l.s4 1934713408
        %v1378 = vunpack.c.0.s8 %v1377
        %v1379 = vperm.slane %v1373, %v1378
        %v1381 = vunpack.c.l.s4 1934713408
        %v1382 = vunpack.c.0.s8 %v1381
        %v1383 = vperm.slane %v1375, %v1382
        %v1384 = vrot.slane %v1379, 4
        %v1385 = vsel %vm568, %v1384, %v1367
        %v1386 = vrot.slane %v1367, 4
        %v1387 = vsel %vm568, %v1379, %v1386
        %v1388 = vrot.slane %v1383, 4
        %v1389 = vsel %vm568, %v1388, %v1371
        %v1390 = vrot.slane %v1371, 4
        %v1391 = vsel %vm568, %v1383, %v1390
        %1393 = vrot.lane.b32.xlu0 %v1387, 8
        %v1394 = vpop.permute.xlu0 %1393
        %1397 = vrot.lane.b32.xlu0 %v1389, 16
        %v1398 = vpop.permute.xlu0 %1397
        %1401 = vrot.lane.b32.xlu0 %v1391, 24
        %v1402 = vpop.permute.xlu0 %1401
        %v1404 = vsel %vm1053, %v1385, %v1394
        %v1405 = vsel %vm1145, %v1404, %v1398
        %vm1406 = vcmask 195584
        %v1407 = vsel %vm1406, %v1405, %v1402
        %v1408 = vpack.c.bf16 %v1407, %v1407
        %v1410 = vperm.slane %v544, 0
        %v1416 = vunpack.c.l.b16 %v540
        %v1417 = vunpack.c.l.b16 %v541
        %v1418 = vunpack.c.l.b16 %v542
        %v1419 = vunpack.c.l.b16 %v543
        %v1420 = vpack.c.b16 %v1417, %v1416
        %v1421 = vpack.c.b16 %v1419, %v1418
        %v1425 = vsel %vm434, %v1408, 0
        %1427 = vmatpush.bf16.msra.mxu0 0
        %1428 = vmatpush.bf16.msra.mxu0 0
        %1429 = vmatpush.bf16.msra.mxu0 0
        %1430 = vmatpush.bf16.msra.mxu0 0
        %1431 = vmatpush.bf16.msra.mxu0 0
        %1432 = vmatpush.bf16.msra.mxu0 0
        %1433 = vmatpush.bf16.msra.mxu0 %v1421
        %1434 = vmatpush.bf16.msra.mxu0 %v1420
        %1435 = vmatmul.bf16.gmra.mxu0 %v1425
        %v1436 = vpop.f32.mrf.mxu0
        %v1437 = vadd.f32 %v1410, %v1436
        %v1438 = vpop.f32.mrf.mxu0
        %1439 = vdwg.mxu0
        %1440 = vadd.xlane.f32.xlu0 %v1437
        %v1441 = vpop.xlane.xlu0 %1440
        %v1442 = vmul.f32 %v1441, 0.03125
        %v1443 = vsub.f32 %v1437, %v1442
        %v1444 = vmul.f32 %v1443, %v1443
        %1445 = vadd.xlane.f32.xlu0 %v1444
        %v1446 = vpop.xlane.xlu0 %1445
        %v1447 = vmul.f32 %v1442, 96.0
        %v1448 = vmul.f32 %v1447, %v1442
        %v1449 = vsub.f32 %v1446, %v1448
        %v1450 = vmul.f32 %v1449, 0.03125
        %v1451 = vadd.f32 %v1450, 1e-05
        %v1452 = vrsqrt.pop %v1451
        %v1453 = vmul.f32 %v1452, %v1451
        %v1454 = vmul.f32 %v1453, %v1452
        %v1455 = vmul.f32 0.5, %v1454
        %v1456 = vsub.f32 1.5, %v1455
        %v1457 = vmul.f32 %v1452, %v1456
        %vm1458 = vweird.f32 %v1451
        %vm1459 = vweird.f32 %v1452
        %vm1460 = vmor %vm1458, %vm1459
        %v1461 = vsel %vm1460, %v1452, %v1457
        %v1462 = vmul.f32 %v1443, %v1461
        %v1464 = vperm.slane %v545, 0
        %v1466 = vmul.f32 %v1462, %v1464
        %v1468 = vperm.slane %v546, 0
        %v1470 = vadd.f32 %v1466, %v1468
        %1471 = vst [vmem:[%s429] sm:$0xff] %v1470
        %s1472 = sand.u32 %s252, 1
        %s1473 = scalar_lea.sflag [#allocation4], %s1472
        %s1474 = sand.u32 %s252, 1
        %s1475 = smul.addr %s1474, 8
        %s1476 = scalar_lea.vmem [#allocation10], %s1475
        // Predicated region
        $region77: #{tpu_custom_call.1} parent=59 // pred_check
          %p1477 = pneg %p262
        $region78: #{tpu_custom_call.1} parent=59 // pred_check_branch
          %1479 = sbr.rel (%p1477) target = $region80
        $region79: #{tpu_custom_call.1} parent=59 // pred_region
          %1481 = vsyncadd %s1473, 0
          %s1482 = smul.addr %s29, 8
          %s1483 = scalar_lea.hbm %s10, %s1482
          %s1485 = sshll.u32 %s1476, 4
          %s1486 = int_to_ptr.vmem [resolvable:$true] %s1485
          %s1487 = sshll.u32 %s1483, 4
          %s1488 = int_to_ptr.hbm [resolvable:$true] %s1487
          %1490 = dma.vmem_to_hbm [thread:$0]  %s1486, 128, %s1488, %s1473
        $region80: #{tpu_custom_call.1} parent=59 // pred_fallthru
          _
      $region60: #{tpu_custom_call.1} parent=5 // pred_fallthru
        _
      %p1491 = scmp.le.s32.totalorder 2, %s24
      // Predicated region
      $region81: #{tpu_custom_call.1} parent=5 // pred_check
        %p1492 = pneg %p1491
      $region82: #{tpu_custom_call.1} parent=5 // pred_check_branch
        %1494 = sbr.rel (%p1492) target = $region84
      $region83: #{tpu_custom_call.1} parent=5 // pred_region
        %s1495 = ssub.s32 %s24, 2
        // Predicated region
        $region85: #{tpu_custom_call.1} parent=83 // pred_check
          %p1496 = pneg %p268
        $region86: #{tpu_custom_call.1} parent=83 // pred_check_branch
          %1498 = sbr.rel (%p1496) target = $region88
        $region87: #{tpu_custom_call.1} parent=83 // pred_region
          %s1499 = sand.u32 %s253, 1
          %s1500 = scalar_lea.sflag [#allocation4], %s1499
          %s1501 = sand.u32 %s253, 1
          %s1502 = smul.addr %s1501, 8
          %s1503 = scalar_lea.vmem [#allocation10], %s1502
          %1505 = dma.done %s1500, 128
        $region88: #{tpu_custom_call.1} parent=83 // pred_fallthru
          _
      $region84: #{tpu_custom_call.1} parent=5 // pred_fallthru
        _
    $region6: #{tpu_custom_call.1} parent=1 // loop_footer
      %s28 = sadd.s32 1, %s24
    $region7: #{tpu_custom_call.1} parent=1 // loop_footer_branch
      %23 = sbr.rel target = $region3
    $region8: #{tpu_custom_call.1} parent=1 // loop_exit
      _
    %1506 = vsyncpa [#allocation3], 1
    %s1507 = scalar_lea.sflag [#allocation3], 1
    %1508 = vsyncpa %s1507, 1
    %1509 = vsyncpa [#allocation6], 1
    %1510 = vsyncpa [#allocation9], 1
    %1511 = vsyncpa [#allocation4], 1
    %s1512 = scalar_lea.sflag [#allocation4], 1
    %1513 = vsyncpa %s1512, 1

</llo_original>
